<compile_context>
chip_gen: v5e
topology: v5e:2x2
jax: 0.10.0
libtpu: 0.0.40
codegen_flags: <defaults>
</compile_context>

<pallas_src>
import jax
import jax.numpy as jnp
from jax import lax
from jax.experimental import pallas as pl
from jax.experimental.pallas import tpu as pltpu

LANE = 128
SUBLANE = 8


def _rup(n, m):
    return ((n + m - 1) // m) * m


def _pad2d(x, rows, cols, dtype=None):
    out = jnp.pad(x, ((0, rows - x.shape[0]), (0, cols - x.shape[1])))
    return out.astype(dtype) if dtype is not None else out


def _full_spec(shape):
    return pl.BlockSpec(shape, lambda: (0,) * len(shape))


# ----------------------------------------------------------------------------
# Fused Pallas kernel: both HeteroConv layers in one call
# ----------------------------------------------------------------------------
def _make_fused_gnn_kernel(node_types, edge_types, dst_groups):
    """Ref layout:
         [A_et] * n_et, [X0_nt] * n_nt,
         [(Wstack_l_et, b_l_et) for layer l in (0,1) for et] (2 refs each),
         [out_nt] * n_nt, [scratch_nt] * n_nt
       Per edge type e into dst d:
         h_e = l2_normalize([A_e @ X_src | X_dst] @ [Wl_e^T ; Wr_e^T] + b_e)
       x_d <- relu(mean_e h_e)   (layer 1 -> VMEM scratch, layer 2 -> output)
    """
    n_et = len(edge_types)
    n_nt = len(node_types)
    nt_idx = {nt: i for i, nt in enumerate(node_types)}
    et_idx = {et: i for i, et in enumerate(edge_types)}

    def kernel(*refs):
        adj = refs[:n_et]
        emb = refs[n_et:n_et + n_nt]
        w_off = n_et + n_nt
        n_w = 2 * 2 * n_et
        out_refs = refs[w_off + n_w: w_off + n_w + n_nt]
        scr_refs = refs[w_off + n_w + n_nt:]

        def wrefs(layer, e):
            base = w_off + 2 * (layer * n_et + e)
            return refs[base], refs[base + 1]

        def layer_pass(layer, read_x, write_refs):
            for d in node_types:
                ets = dst_groups.get(d, [])
                if not ets:
                    continue
                xd = read_x[d]                                        # bf16 [Nd, H_pad]
                acc = None
                for et in ets:
                    e = et_idx[et]
                    xs = read_x[et[0]]                                # bf16 [Ns, H_pad]
                    # mean neighbor aggregation as a normalized-adjacency matmul (MXU)
                    agg = jnp.dot(adj[e][...], xs,
                                  preferred_element_type=jnp.float32)
                    # merged Wl/Wr matmul: K=256 fills the 256-deep MXU
                    lhs = jnp.concatenate([agg.astype(jnp.bfloat16), xd], axis=-1)
                    ws, bl = wrefs(layer, e)
                    h = jnp.dot(lhs, ws[...], preferred_element_type=jnp.float32)
                    h = h + bl[...]                                   # f32 bias [1, H_pad]
                    # F.normalize(h, p=2, dim=-1): h / max(||h||, 1e-12)  (rsqrt -> EUP)
                    ssq = jnp.sum(h * h, axis=-1, keepdims=True)
                    h = h * lax.rsqrt(jnp.maximum(ssq, 1e-24))
                    acc = h if acc is None else acc + h
                out = acc * (1.0 / len(ets))                          # HeteroConv aggr='mean'
                # TODO(synk): F.dropout(p=0.5, training=True) is stochastic (torch RNG);
                # eval-mode (identity) dropout is used here.
                # NOTE: padded destination rows hold relu(l2_normalize(bias)) junk; they
                # are masked downstream (zero adjacency columns, real-index-only gather).
                write_refs[nt_idx[d]][...] = jnp.maximum(out, 0.0).astype(jnp.bfloat16)

        # layer 1: embeddings -> VMEM scratch
        read0 = {nt: emb[nt_idx[nt]][...] for nt in node_types}
        layer_pass(0, read0, scr_refs)
        # layer 2: VMEM scratch -> outputs (no HBM round-trip in between)
        read1 = {nt: scr_refs[nt_idx[nt]][...] for nt in node_types}
        layer_pass(1, read1, out_refs)

    return kernel


# ----------------------------------------------------------------------------
# Glue: adjacency, params, forward
# ----------------------------------------------------------------------------
def mean_adjacency(edge_index, n_src, n_dst, n_src_pad, n_dst_pad):
    """Dense row-normalized adjacency: A[i, j] = 1/in_deg(i) for edge j -> i (padded, bf16)."""
    src, dst = edge_index[0], edge_index[1]
    a = jnp.zeros((n_dst, n_src), jnp.float32).at[dst, src].add(1.0)
    deg = jnp.sum(a, axis=1, keepdims=True)
    a = a / jnp.maximum(deg, 1.0)
    return _pad2d(a, n_dst_pad, n_src_pad, jnp.bfloat16)


def init_model_params(key, node_types, edge_types, num_nodes, hidden):
    """Embedding tables + per-layer / per-edge-type SAGEConv weights (f32, torch layout)."""
    params = {"emb": {}, "convs": []}
    for nt in node_types:
        key, k = jax.random.split(key)
        params["emb"][nt] = jax.random.normal(k, (num_nodes[nt], hidden), jnp.float32)
    for _ in range(2):
        layer = {}
        for et in edge_types:
            key, k1, k2, k3 = jax.random.split(key, 4)
            layer[et] = dict(
                w_l=jax.random.normal(k1, (hidden, hidden), jnp.float32) / jnp.sqrt(hidden),
                b_l=jax.random.normal(k2, (hidden,), jnp.float32) * 0.01,
                w_r=jax.random.normal(k3, (hidden, hidden), jnp.float32) / jnp.sqrt(hidden),
            )
        params["convs"].append(layer)
    # NOTE: GNN also creates self.linear[node_type] = Linear(-1, hidden), but it is
    # never used in forward(), so it is intentionally not instantiated.
    return params


def prepare_kernel_params(params, hidden):
    """Pre-transpose / lane-pad / bf16-cast / stack the conv weights once (static)."""
    h_pad = _rup(hidden, LANE)
    prepped = []
    for layer in params["convs"]:
        lp = {}
        for et, p in layer.items():
            wl_t = _pad2d(p["w_l"].T, h_pad, h_pad, jnp.bfloat16)       # [H_pad, H_pad]
            wr_t = _pad2d(p["w_r"].T, h_pad, h_pad, jnp.bfloat16)       # [H_pad, H_pad]
            w_stack = jnp.concatenate([wl_t, wr_t], axis=0)             # [2*H_pad, H_pad]
            bl = _pad2d(p["b_l"][None, :], 1, h_pad, jnp.float32)       # [1, H_pad]
            lp[et] = (w_stack, bl)
        prepped.append(lp)
    return prepped


def build_model_forward(node_types, edge_types, num_nodes, hidden, link_type,
                        num_label_edges):
    h_pad = _rup(hidden, LANE)
    n_pad = {nt: _rup(num_nodes[nt], SUBLANE) for nt in node_types}
    dst_groups = {}
    for et in edge_types:
        dst_groups.setdefault(et[2], []).append(et)
    # Every node type must receive at least one edge type (HeteroConv drops
    # types with no incoming edges, which this fused layout does not model).
    assert all(nt in dst_groups for nt in node_types), dst_groups
    kernel = _make_fused_gnn_kernel(node_types, edge_types, dst_groups)

    @jax.jit
    def forward(conv_params, emb_pad, adj_pad, edge_label_index):
        # Model.forward: x_dict = full embedding tables (already lane-padded bf16).
        flat = [adj_pad[et] for et in edge_types]
        flat += [emb_pad[nt] for nt in node_types]
        for layer in conv_params:
            for et in edge_types:
                w_stack, bl = layer[et]
                flat += [w_stack, bl]
        outs = pl.pallas_call(
            kernel,
            out_shape=tuple(
                jax.ShapeDtypeStruct((n_pad[nt], h_pad), jnp.bfloat16)
                for nt in node_types),
            in_specs=[_full_spec(t.shape) for t in flat],
            out_specs=tuple(_full_spec((n_pad[nt], h_pad)) for nt in node_types),
            scratch_shapes=[pltpu.VMEM((n_pad[nt], h_pad), jnp.bfloat16)
                            for nt in node_types],
        )(*flat)
        x = dict(zip(node_types, outs))
        # Classifier: (x_src[eli0] * x_dst[eli1]).sum(-1).  For E=10 the gather +
        # dot is cheaper as plain XLA than a dedicated pallas_call + layout glue.
        xs = jnp.take(x[link_type[0]], edge_label_index[0], axis=0).astype(jnp.float32)
        xd = jnp.take(x[link_type[2]], edge_label_index[1], axis=0).astype(jnp.float32)
        return jnp.einsum("eh,eh->e", xs, xd)

    return forward


# ----------------------------------------------------------------------------
if __name__ == "__main__":
    hidden = 32
    node_types = ["user", "item"]
    edge_types = [
        ("user", "follows", "user"),
        ("user", "rates", "item"),
        ("item", "rev_rates", "user"),
    ]
    num_nodes = {"user": 16, "item": 24}
    link_type = ("user", "rates", "item")
    num_label_edges = 10
    num_edges = 40

    key = jax.random.PRNGKey(0)
    key, kp = jax.random.split(key)
    params = init_model_params(kp, node_types, edge_types, num_nodes, hidden)

    n_pad = {nt: _rup(num_nodes[nt], SUBLANE) for nt in node_types}
    h_pad = _rup(hidden, LANE)

    # Static graph: build padded, bf16, row-normalized adjacencies once (hoisted
    # out of forward).
    adj_pad = {}
    for et in edge_types:
        s, _, d = et
        key, ks, kd = jax.random.split(key, 3)
        src = jax.random.randint(ks, (num_edges,), 0, num_nodes[s])
        dst = jax.random.randint(kd, (num_edges,), 0, num_nodes[d])
        ei = jnp.stack([src, dst], axis=0)
        adj_pad[et] = mean_adjacency(ei, num_nodes[s], num_nodes[d], n_pad[s], n_pad[d])

    # Supervision edges to score.
    key, kls, kld = jax.random.split(key, 3)
    edge_label_index = jnp.stack(
        [
            jax.random.randint(kls, (num_label_edges,), 0, num_nodes[link_type[0]]),
            jax.random.randint(kld, (num_label_edges,), 0, num_nodes[link_type[2]]),
        ],
        axis=0,
    )

    conv_params = prepare_kernel_params(params, hidden)
    emb_pad = {
        nt: _pad2d(params["emb"][nt], n_pad[nt], h_pad, jnp.bfloat16) for nt in node_types
    }

    forward = build_model_forward(node_types, edge_types, num_nodes, hidden,
                                  link_type, num_label_edges)
    scores = forward(conv_params, emb_pad, adj_pad, edge_label_index)
    jax.block_until_ready(scores)

    assert scores.shape == (num_label_edges,), scores.shape
    assert bool(jnp.all(jnp.isfinite(scores)))
    print("KERNEL_OK")
</pallas_src>

<mosaic_0001>
module attributes {stable_mosaic.version = 11 : i64} {
  func.func @kernel(%arg0: memref<16x16xbf16, #tpu.memory_space<vmem>>, %arg1: memref<24x16xbf16, #tpu.memory_space<vmem>>, %arg2: memref<16x24xbf16, #tpu.memory_space<vmem>>, %arg3: memref<16x128xbf16, #tpu.memory_space<vmem>>, %arg4: memref<24x128xbf16, #tpu.memory_space<vmem>>, %arg5: memref<256x128xbf16, #tpu.memory_space<vmem>>, %arg6: memref<1x128xf32, #tpu.memory_space<vmem>>, %arg7: memref<256x128xbf16, #tpu.memory_space<vmem>>, %arg8: memref<1x128xf32, #tpu.memory_space<vmem>>, %arg9: memref<256x128xbf16, #tpu.memory_space<vmem>>, %arg10: memref<1x128xf32, #tpu.memory_space<vmem>>, %arg11: memref<256x128xbf16, #tpu.memory_space<vmem>>, %arg12: memref<1x128xf32, #tpu.memory_space<vmem>>, %arg13: memref<256x128xbf16, #tpu.memory_space<vmem>>, %arg14: memref<1x128xf32, #tpu.memory_space<vmem>>, %arg15: memref<256x128xbf16, #tpu.memory_space<vmem>>, %arg16: memref<1x128xf32, #tpu.memory_space<vmem>>, %arg17: memref<16x128xbf16, #tpu.memory_space<vmem>>, %arg18: memref<24x128xbf16, #tpu.memory_space<vmem>>, %arg19: memref<16x128xbf16, #tpu.memory_space<vmem>>, %arg20: memref<24x128xbf16, #tpu.memory_space<vmem>>) attributes {dimension_semantics = [], scalar_prefetch = 0 : i64, scratch_operands = 2 : i64, tpu.core_type = #tpu.core_type<tc>} {
    %c0 = arith.constant 0 : index
    %c0_0 = arith.constant 0 : index
    %0 = vector.load %arg3[%c0, %c0_0] : memref<16x128xbf16, #tpu.memory_space<vmem>>, vector<16x128xbf16>
    %c0_1 = arith.constant 0 : index
    %c0_2 = arith.constant 0 : index
    %1 = vector.load %arg4[%c0_1, %c0_2] : memref<24x128xbf16, #tpu.memory_space<vmem>>, vector<24x128xbf16>
    %c0_3 = arith.constant 0 : index
    %c0_4 = arith.constant 0 : index
    %2 = vector.load %arg0[%c0_3, %c0_4] : memref<16x16xbf16, #tpu.memory_space<vmem>>, vector<16x16xbf16>
    %cst = arith.constant dense<0.000000e+00> : vector<16x128xf32>
    %3 = tpu.matmul %2, %0, %cst {dimension_numbers = #tpu.dot_dimension_numbers<[1], [0], [0], [1], [0, 0, 1, 1], [], []>} : vector<16x16xbf16>, vector<16x128xbf16>, vector<16x128xf32> -> vector<16x128xf32>
    %4 = arith.truncf %3 : vector<16x128xf32> to vector<16x128xbf16>
    %5 = tpu.concatenate %4, %0 in 1 : vector<16x128xbf16>, vector<16x128xbf16> -> vector<16x256xbf16>
    %c0_5 = arith.constant 0 : index
    %c0_6 = arith.constant 0 : index
    %6 = vector.load %arg5[%c0_5, %c0_6] : memref<256x128xbf16, #tpu.memory_space<vmem>>, vector<256x128xbf16>
    %cst_7 = arith.constant dense<0.000000e+00> : vector<16x128xf32>
    %7 = tpu.matmul %5, %6, %cst_7 {dimension_numbers = #tpu.dot_dimension_numbers<[1], [0], [0], [1], [0, 0, 1, 1], [], []>} : vector<16x256xbf16>, vector<256x128xbf16>, vector<16x128xf32> -> vector<16x128xf32>
    %c0_8 = arith.constant 0 : index
    %c0_9 = arith.constant 0 : index
    %8 = vector.load %arg6[%c0_8, %c0_9] : memref<1x128xf32, #tpu.memory_space<vmem>>, vector<1x128xf32>
    %9 = vector.broadcast %8 : vector<1x128xf32> to vector<16x128xf32>
    %10 = arith.addf %7, %9 : vector<16x128xf32>
    %11 = arith.mulf %10, %10 : vector<16x128xf32>
    %cst_10 = arith.constant dense<0.000000e+00> : vector<16xf32>
    %12 = vector.multi_reduction <add>, %11, %cst_10 [1] : vector<16x128xf32> to vector<16xf32>
    %13 = vector.shape_cast %12 : vector<16xf32> to vector<16x1xf32>
    %cst_11 = arith.constant 1.000000e-24 : f32
    %14 = vector.broadcast %cst_11 : f32 to vector<16x1xf32>
    %15 = arith.maximumf %13, %14 : vector<16x1xf32>
    %16 = math.rsqrt %15 : vector<16x1xf32>
    %17 = vector.broadcast %16 : vector<16x1xf32> to vector<16x128xf32>
    %18 = arith.mulf %10, %17 : vector<16x128xf32>
    %c0_12 = arith.constant 0 : index
    %c0_13 = arith.constant 0 : index
    %19 = vector.load %arg2[%c0_12, %c0_13] : memref<16x24xbf16, #tpu.memory_space<vmem>>, vector<16x24xbf16>
    %cst_14 = arith.constant dense<0.000000e+00> : vector<16x128xf32>
    %20 = tpu.matmul %19, %1, %cst_14 {dimension_numbers = #tpu.dot_dimension_numbers<[1], [0], [0], [1], [0, 0, 1, 1], [], []>} : vector<16x24xbf16>, vector<24x128xbf16>, vector<16x128xf32> -> vector<16x128xf32>
    %21 = arith.truncf %20 : vector<16x128xf32> to vector<16x128xbf16>
    %22 = tpu.concatenate %21, %0 in 1 : vector<16x128xbf16>, vector<16x128xbf16> -> vector<16x256xbf16>
    %c0_15 = arith.constant 0 : index
    %c0_16 = arith.constant 0 : index
    %23 = vector.load %arg9[%c0_15, %c0_16] : memref<256x128xbf16, #tpu.memory_space<vmem>>, vector<256x128xbf16>
    %cst_17 = arith.constant dense<0.000000e+00> : vector<16x128xf32>
    %24 = tpu.matmul %22, %23, %cst_17 {dimension_numbers = #tpu.dot_dimension_numbers<[1], [0], [0], [1], [0, 0, 1, 1], [], []>} : vector<16x256xbf16>, vector<256x128xbf16>, vector<16x128xf32> -> vector<16x128xf32>
    %c0_18 = arith.constant 0 : index
    %c0_19 = arith.constant 0 : index
    %25 = vector.load %arg10[%c0_18, %c0_19] : memref<1x128xf32, #tpu.memory_space<vmem>>, vector<1x128xf32>
    %26 = vector.broadcast %25 : vector<1x128xf32> to vector<16x128xf32>
    %27 = arith.addf %24, %26 : vector<16x128xf32>
    %28 = arith.mulf %27, %27 : vector<16x128xf32>
    %cst_20 = arith.constant dense<0.000000e+00> : vector<16xf32>
    %29 = vector.multi_reduction <add>, %28, %cst_20 [1] : vector<16x128xf32> to vector<16xf32>
    %30 = vector.shape_cast %29 : vector<16xf32> to vector<16x1xf32>
    %cst_21 = arith.constant 1.000000e-24 : f32
    %31 = vector.broadcast %cst_21 : f32 to vector<16x1xf32>
    %32 = arith.maximumf %30, %31 : vector<16x1xf32>
    %33 = math.rsqrt %32 : vector<16x1xf32>
    %34 = vector.broadcast %33 : vector<16x1xf32> to vector<16x128xf32>
    %35 = arith.mulf %27, %34 : vector<16x128xf32>
    %36 = arith.addf %18, %35 : vector<16x128xf32>
    %cst_22 = arith.constant 5.000000e-01 : f32
    %37 = vector.broadcast %cst_22 : f32 to vector<16x128xf32>
    %38 = arith.mulf %36, %37 : vector<16x128xf32>
    %cst_23 = arith.constant 0.000000e+00 : f32
    %39 = vector.broadcast %cst_23 : f32 to vector<16x128xf32>
    %40 = arith.maximumf %38, %39 : vector<16x128xf32>
    %41 = arith.truncf %40 : vector<16x128xf32> to vector<16x128xbf16>
    %c0_24 = arith.constant 0 : index
    %c0_25 = arith.constant 0 : index
    %42 = vector.load %arg19[%c0_24, %c0_25] : memref<16x128xbf16, #tpu.memory_space<vmem>>, vector<16x128xbf16>
    tpu.vector_store %arg19[%c0_24, %c0_25], %41 {strides = array<i32>} : memref<16x128xbf16, #tpu.memory_space<vmem>>, vector<16x128xbf16>,
    %c0_26 = arith.constant 0 : index
    %c0_27 = arith.constant 0 : index
    %43 = vector.load %arg1[%c0_26, %c0_27] : memref<24x16xbf16, #tpu.memory_space<vmem>>, vector<24x16xbf16>
    %cst_28 = arith.constant dense<0.000000e+00> : vector<24x128xf32>
    %44 = tpu.matmul %43, %0, %cst_28 {dimension_numbers = #tpu.dot_dimension_numbers<[1], [0], [0], [1], [0, 0, 1, 1], [], []>} : vector<24x16xbf16>, vector<16x128xbf16>, vector<24x128xf32> -> vector<24x128xf32>
    %45 = arith.truncf %44 : vector<24x128xf32> to vector<24x128xbf16>
    %46 = tpu.concatenate %45, %1 in 1 : vector<24x128xbf16>, vector<24x128xbf16> -> vector<24x256xbf16>
    %c0_29 = arith.constant 0 : index
    %c0_30 = arith.constant 0 : index
    %47 = vector.load %arg7[%c0_29, %c0_30] : memref<256x128xbf16, #tpu.memory_space<vmem>>, vector<256x128xbf16>
    %cst_31 = arith.constant dense<0.000000e+00> : vector<24x128xf32>
    %48 = tpu.matmul %46, %47, %cst_31 {dimension_numbers = #tpu.dot_dimension_numbers<[1], [0], [0], [1], [0, 0, 1, 1], [], []>} : vector<24x256xbf16>, vector<256x128xbf16>, vector<24x128xf32> -> vector<24x128xf32>
    %c0_32 = arith.constant 0 : index
    %c0_33 = arith.constant 0 : index
    %49 = vector.load %arg8[%c0_32, %c0_33] : memref<1x128xf32, #tpu.memory_space<vmem>>, vector<1x128xf32>
    %50 = vector.broadcast %49 : vector<1x128xf32> to vector<24x128xf32>
    %51 = arith.addf %48, %50 : vector<24x128xf32>
    %52 = arith.mulf %51, %51 : vector<24x128xf32>
    %cst_34 = arith.constant dense<0.000000e+00> : vector<24xf32>
    %53 = vector.multi_reduction <add>, %52, %cst_34 [1] : vector<24x128xf32> to vector<24xf32>
    %54 = vector.shape_cast %53 : vector<24xf32> to vector<24x1xf32>
    %cst_35 = arith.constant 1.000000e-24 : f32
    %55 = vector.broadcast %cst_35 : f32 to vector<24x1xf32>
    %56 = arith.maximumf %54, %55 : vector<24x1xf32>
    %57 = math.rsqrt %56 : vector<24x1xf32>
    %58 = vector.broadcast %57 : vector<24x1xf32> to vector<24x128xf32>
    %59 = arith.mulf %51, %58 : vector<24x128xf32>
    %cst_36 = arith.constant 1.000000e+00 : f32
    %60 = vector.broadcast %cst_36 : f32 to vector<24x128xf32>
    %61 = arith.mulf %59, %60 : vector<24x128xf32>
    %cst_37 = arith.constant 0.000000e+00 : f32
    %62 = vector.broadcast %cst_37 : f32 to vector<24x128xf32>
    %63 = arith.maximumf %61, %62 : vector<24x128xf32>
    %64 = arith.truncf %63 : vector<24x128xf32> to vector<24x128xbf16>
    %c0_38 = arith.constant 0 : index
    %c0_39 = arith.constant 0 : index
    %65 = vector.load %arg20[%c0_38, %c0_39] : memref<24x128xbf16, #tpu.memory_space<vmem>>, vector<24x128xbf16>
    tpu.vector_store %arg20[%c0_38, %c0_39], %64 {strides = array<i32>} : memref<24x128xbf16, #tpu.memory_space<vmem>>, vector<24x128xbf16>,
    %c0_40 = arith.constant 0 : index
    %c0_41 = arith.constant 0 : index
    %66 = vector.load %arg19[%c0_40, %c0_41] : memref<16x128xbf16, #tpu.memory_space<vmem>>, vector<16x128xbf16>
    %c0_42 = arith.constant 0 : index
    %c0_43 = arith.constant 0 : index
    %67 = vector.load %arg20[%c0_42, %c0_43] : memref<24x128xbf16, #tpu.memory_space<vmem>>, vector<24x128xbf16>
    %c0_44 = arith.constant 0 : index
    %c0_45 = arith.constant 0 : index
    %68 = vector.load %arg0[%c0_44, %c0_45] : memref<16x16xbf16, #tpu.memory_space<vmem>>, vector<16x16xbf16>
    %cst_46 = arith.constant dense<0.000000e+00> : vector<16x128xf32>
    %69 = tpu.matmul %68, %66, %cst_46 {dimension_numbers = #tpu.dot_dimension_numbers<[1], [0], [0], [1], [0, 0, 1, 1], [], []>} : vector<16x16xbf16>, vector<16x128xbf16>, vector<16x128xf32> -> vector<16x128xf32>
    %70 = arith.truncf %69 : vector<16x128xf32> to vector<16x128xbf16>
    %71 = tpu.concatenate %70, %66 in 1 : vector<16x128xbf16>, vector<16x128xbf16> -> vector<16x256xbf16>
    %c0_47 = arith.constant 0 : index
    %c0_48 = arith.constant 0 : index
    %72 = vector.load %arg11[%c0_47, %c0_48] : memref<256x128xbf16, #tpu.memory_space<vmem>>, vector<256x128xbf16>
    %cst_49 = arith.constant dense<0.000000e+00> : vector<16x128xf32>
    %73 = tpu.matmul %71, %72, %cst_49 {dimension_numbers = #tpu.dot_dimension_numbers<[1], [0], [0], [1], [0, 0, 1, 1], [], []>} : vector<16x256xbf16>, vector<256x128xbf16>, vector<16x128xf32> -> vector<16x128xf32>
    %c0_50 = arith.constant 0 : index
    %c0_51 = arith.constant 0 : index
    %74 = vector.load %arg12[%c0_50, %c0_51] : memref<1x128xf32, #tpu.memory_space<vmem>>, vector<1x128xf32>
    %75 = vector.broadcast %74 : vector<1x128xf32> to vector<16x128xf32>
    %76 = arith.addf %73, %75 : vector<16x128xf32>
    %77 = arith.mulf %76, %76 : vector<16x128xf32>
    %cst_52 = arith.constant dense<0.000000e+00> : vector<16xf32>
    %78 = vector.multi_reduction <add>, %77, %cst_52 [1] : vector<16x128xf32> to vector<16xf32>
    %79 = vector.shape_cast %78 : vector<16xf32> to vector<16x1xf32>
    %cst_53 = arith.constant 1.000000e-24 : f32
    %80 = vector.broadcast %cst_53 : f32 to vector<16x1xf32>
    %81 = arith.maximumf %79, %80 : vector<16x1xf32>
    %82 = math.rsqrt %81 : vector<16x1xf32>
    %83 = vector.broadcast %82 : vector<16x1xf32> to vector<16x128xf32>
    %84 = arith.mulf %76, %83 : vector<16x128xf32>
    %c0_54 = arith.constant 0 : index
    %c0_55 = arith.constant 0 : index
    %85 = vector.load %arg2[%c0_54, %c0_55] : memref<16x24xbf16, #tpu.memory_space<vmem>>, vector<16x24xbf16>
    %cst_56 = arith.constant dense<0.000000e+00> : vector<16x128xf32>
    %86 = tpu.matmul %85, %67, %cst_56 {dimension_numbers = #tpu.dot_dimension_numbers<[1], [0], [0], [1], [0, 0, 1, 1], [], []>} : vector<16x24xbf16>, vector<24x128xbf16>, vector<16x128xf32> -> vector<16x128xf32>
    %87 = arith.truncf %86 : vector<16x128xf32> to vector<16x128xbf16>
    %88 = tpu.concatenate %87, %66 in 1 : vector<16x128xbf16>, vector<16x128xbf16> -> vector<16x256xbf16>
    %c0_57 = arith.constant 0 : index
    %c0_58 = arith.constant 0 : index
    %89 = vector.load %arg15[%c0_57, %c0_58] : memref<256x128xbf16, #tpu.memory_space<vmem>>, vector<256x128xbf16>
    %cst_59 = arith.constant dense<0.000000e+00> : vector<16x128xf32>
    %90 = tpu.matmul %88, %89, %cst_59 {dimension_numbers = #tpu.dot_dimension_numbers<[1], [0], [0], [1], [0, 0, 1, 1], [], []>} : vector<16x256xbf16>, vector<256x128xbf16>, vector<16x128xf32> -> vector<16x128xf32>
    %c0_60 = arith.constant 0 : index
    %c0_61 = arith.constant 0 : index
    %91 = vector.load %arg16[%c0_60, %c0_61] : memref<1x128xf32, #tpu.memory_space<vmem>>, vector<1x128xf32>
    %92 = vector.broadcast %91 : vector<1x128xf32> to vector<16x128xf32>
    %93 = arith.addf %90, %92 : vector<16x128xf32>
    %94 = arith.mulf %93, %93 : vector<16x128xf32>
    %cst_62 = arith.constant dense<0.000000e+00> : vector<16xf32>
    %95 = vector.multi_reduction <add>, %94, %cst_62 [1] : vector<16x128xf32> to vector<16xf32>
    %96 = vector.shape_cast %95 : vector<16xf32> to vector<16x1xf32>
    %cst_63 = arith.constant 1.000000e-24 : f32
    %97 = vector.broadcast %cst_63 : f32 to vector<16x1xf32>
    %98 = arith.maximumf %96, %97 : vector<16x1xf32>
    %99 = math.rsqrt %98 : vector<16x1xf32>
    %100 = vector.broadcast %99 : vector<16x1xf32> to vector<16x128xf32>
    %101 = arith.mulf %93, %100 : vector<16x128xf32>
    %102 = arith.addf %84, %101 : vector<16x128xf32>
    %cst_64 = arith.constant 5.000000e-01 : f32
    %103 = vector.broadcast %cst_64 : f32 to vector<16x128xf32>
    %104 = arith.mulf %102, %103 : vector<16x128xf32>
    %cst_65 = arith.constant 0.000000e+00 : f32
    %105 = vector.broadcast %cst_65 : f32 to vector<16x128xf32>
    %106 = arith.maximumf %104, %105 : vector<16x128xf32>
    %107 = arith.truncf %106 : vector<16x128xf32> to vector<16x128xbf16>
    %c0_66 = arith.constant 0 : index
    %c0_67 = arith.constant 0 : index
    %108 = vector.load %arg17[%c0_66, %c0_67] : memref<16x128xbf16, #tpu.memory_space<vmem>>, vector<16x128xbf16>
    tpu.vector_store %arg17[%c0_66, %c0_67], %107 {strides = array<i32>} : memref<16x128xbf16, #tpu.memory_space<vmem>>, vector<16x128xbf16>,
    %c0_68 = arith.constant 0 : index
    %c0_69 = arith.constant 0 : index
    %109 = vector.load %arg1[%c0_68, %c0_69] : memref<24x16xbf16, #tpu.memory_space<vmem>>, vector<24x16xbf16>
    %cst_70 = arith.constant dense<0.000000e+00> : vector<24x128xf32>
    %110 = tpu.matmul %109, %66, %cst_70 {dimension_numbers = #tpu.dot_dimension_numbers<[1], [0], [0], [1], [0, 0, 1, 1], [], []>} : vector<24x16xbf16>, vector<16x128xbf16>, vector<24x128xf32> -> vector<24x128xf32>
    %111 = arith.truncf %110 : vector<24x128xf32> to vector<24x128xbf16>
    %112 = tpu.concatenate %111, %67 in 1 : vector<24x128xbf16>, vector<24x128xbf16> -> vector<24x256xbf16>
    %c0_71 = arith.constant 0 : index
    %c0_72 = arith.constant 0 : index
    %113 = vector.load %arg13[%c0_71, %c0_72] : memref<256x128xbf16, #tpu.memory_space<vmem>>, vector<256x128xbf16>
    %cst_73 = arith.constant dense<0.000000e+00> : vector<24x128xf32>
    %114 = tpu.matmul %112, %113, %cst_73 {dimension_numbers = #tpu.dot_dimension_numbers<[1], [0], [0], [1], [0, 0, 1, 1], [], []>} : vector<24x256xbf16>, vector<256x128xbf16>, vector<24x128xf32> -> vector<24x128xf32>
    %c0_74 = arith.constant 0 : index
    %c0_75 = arith.constant 0 : index
    %115 = vector.load %arg14[%c0_74, %c0_75] : memref<1x128xf32, #tpu.memory_space<vmem>>, vector<1x128xf32>
    %116 = vector.broadcast %115 : vector<1x128xf32> to vector<24x128xf32>
    %117 = arith.addf %114, %116 : vector<24x128xf32>
    %118 = arith.mulf %117, %117 : vector<24x128xf32>
    %cst_76 = arith.constant dense<0.000000e+00> : vector<24xf32>
    %119 = vector.multi_reduction <add>, %118, %cst_76 [1] : vector<24x128xf32> to vector<24xf32>
    %120 = vector.shape_cast %119 : vector<24xf32> to vector<24x1xf32>
    %cst_77 = arith.constant 1.000000e-24 : f32
    %121 = vector.broadcast %cst_77 : f32 to vector<24x1xf32>
    %122 = arith.maximumf %120, %121 : vector<24x1xf32>
    %123 = math.rsqrt %122 : vector<24x1xf32>
    %124 = vector.broadcast %123 : vector<24x1xf32> to vector<24x128xf32>
    %125 = arith.mulf %117, %124 : vector<24x128xf32>
    %cst_78 = arith.constant 1.000000e+00 : f32
    %126 = vector.broadcast %cst_78 : f32 to vector<24x128xf32>
    %127 = arith.mulf %125, %126 : vector<24x128xf32>
    %cst_79 = arith.constant 0.000000e+00 : f32
    %128 = vector.broadcast %cst_79 : f32 to vector<24x128xf32>
    %129 = arith.maximumf %127, %128 : vector<24x128xf32>
    %130 = arith.truncf %129 : vector<24x128xf32> to vector<24x128xbf16>
    %c0_80 = arith.constant 0 : index
    %c0_81 = arith.constant 0 : index
    %131 = vector.load %arg18[%c0_80, %c0_81] : memref<24x128xbf16, #tpu.memory_space<vmem>>, vector<24x128xbf16>
    tpu.vector_store %arg18[%c0_80, %c0_81], %130 {strides = array<i32>} : memref<24x128xbf16, #tpu.memory_space<vmem>>, vector<24x128xbf16>,
    return
  }
}

</mosaic_0001>

<llo_original>
// kernel: forward.1
$region0: #{forward.1}
  #allocation0 [shape = 'u32[]', space=smem, size = 0x4, offset = 0x4, fixed_abs, tag = 'smem constant byte address 0x4 - core index']
  #allocation1 [shape = 'u32[72,128]{1,0:T(1,128)}', space=vmem, size = 0x9000, scoped, tag = 'internal scratch']
  #allocation2 [shape = 'bf16[16,128]{1,0:T(8,128)(2,1)}', space=vmem, size = 0x1000, scoped, tag = 'scratch operand']
  #allocation3 [shape = 'bf16[24,128]{1,0:T(8,128)(2,1)}', space=vmem, size = 0x1800, scoped, tag = 'scratch operand']
  %s0 = inlined_call_operand.vmem [shape: bf16[16,16], index: 0, kind: input, shape index: {}]
  %s1 = inlined_call_operand.vmem [shape: bf16[24,16], index: 1, kind: input, shape index: {}]
  %s2 = inlined_call_operand.vmem [shape: bf16[16,24], index: 2, kind: input, shape index: {}]
  %s3 = inlined_call_operand.hbm [shape: bf16[16,128], index: 3, kind: input, shape index: {}]
  %s4 = inlined_call_operand.vmem [shape: bf16[24,128], index: 4, kind: input, shape index: {}]
  %s5 = inlined_call_operand.hbm [shape: bf16[256,128], index: 5, kind: input, shape index: {}]
  %s6 = inlined_call_operand.hbm [shape: f32[1,128], index: 6, kind: input, shape index: {}]
  %s7 = inlined_call_operand.hbm [shape: bf16[256,128], index: 7, kind: input, shape index: {}]
  %s8 = inlined_call_operand.hbm [shape: f32[1,128], index: 8, kind: input, shape index: {}]
  %s9 = inlined_call_operand.hbm [shape: bf16[256,128], index: 9, kind: input, shape index: {}]
  %s10 = inlined_call_operand.hbm [shape: f32[1,128], index: 10, kind: input, shape index: {}]
  %s11 = inlined_call_operand.hbm [shape: bf16[256,128], index: 11, kind: input, shape index: {}]
  %s12 = inlined_call_operand.hbm [shape: f32[1,128], index: 12, kind: input, shape index: {}]
  %s13 = inlined_call_operand.hbm [shape: bf16[256,128], index: 13, kind: input, shape index: {}]
  %s14 = inlined_call_operand.hbm [shape: f32[1,128], index: 14, kind: input, shape index: {}]
  %s15 = inlined_call_operand.hbm [shape: bf16[256,128], index: 15, kind: input, shape index: {}]
  %s16 = inlined_call_operand.hbm [shape: f32[1,128], index: 16, kind: input, shape index: {}]
  %s17 = inlined_call_operand.vmem [shape: bf16[16,128], index: 17, kind: output, shape index: {0}]
  %s18 = inlined_call_operand.vmem [shape: bf16[24,128], index: 18, kind: output, shape index: {1}]
  %19 = xla_tuple %s17, %s18
  %s20 = sld [smem:[#allocation0]]
  $region138: #{forward.1} parent=0
    _
  %s22 = ssub.s32 1, %s20
  %s23 = scalar_select 0, %s22, %s20
  $region1: #{forward.1} parent=0
    #allocation4 [shape = 'u8[4096]{0}', space=vmem, size = 0x1000, scoped, tag = 'input window, operand 3, single buffered']
    #allocation5 [shape = 's32[1]{0}', space=sflag, size = 0x4, scoped, tag = 'scoped memory for forward.1']
    #allocation6 [shape = 'u8[65536]{0}', space=vmem, size = 0x10000, scoped, tag = 'input window, operand 5, single buffered']
    #allocation7 [shape = 's32[1]{0}', space=sflag, size = 0x4, scoped, tag = 'scoped memory for forward.1']
    #allocation8 [shape = 'u8[512]{0}', space=vmem, size = 0x400, scoped, tag = 'input window, operand 6, single buffered']
    #allocation9 [shape = 'u8[65536]{0}', space=vmem, size = 0x10000, scoped, tag = 'input window, operand 7, single buffered']
    #allocation10 [shape = 's32[1]{0}', space=sflag, size = 0x4, scoped, tag = 'scoped memory for forward.1']
    #allocation11 [shape = 'u8[512]{0}', space=vmem, size = 0x400, scoped, tag = 'input window, operand 8, single buffered']
    #allocation12 [shape = 'u8[65536]{0}', space=vmem, size = 0x10000, scoped, tag = 'input window, operand 9, single buffered']
    #allocation13 [shape = 's32[1]{0}', space=sflag, size = 0x4, scoped, tag = 'scoped memory for forward.1']
    #allocation14 [shape = 'u8[512]{0}', space=vmem, size = 0x400, scoped, tag = 'input window, operand 10, single buffered']
    #allocation15 [shape = 'u8[65536]{0}', space=vmem, size = 0x10000, scoped, tag = 'input window, operand 11, single buffered']
    #allocation16 [shape = 's32[1]{0}', space=sflag, size = 0x4, scoped, tag = 'scoped memory for forward.1']
    #allocation17 [shape = 'u8[512]{0}', space=vmem, size = 0x400, scoped, tag = 'input window, operand 12, single buffered']
    #allocation18 [shape = 'u8[65536]{0}', space=vmem, size = 0x10000, scoped, tag = 'input window, operand 13, single buffered']
    #allocation19 [shape = 's32[1]{0}', space=sflag, size = 0x4, scoped, tag = 'scoped memory for forward.1']
    #allocation20 [shape = 'u8[512]{0}', space=vmem, size = 0x400, scoped, tag = 'input window, operand 14, single buffered']
    #allocation21 [shape = 'u8[65536]{0}', space=vmem, size = 0x10000, scoped, tag = 'input window, operand 15, single buffered']
    #allocation22 [shape = 's32[1]{0}', space=sflag, size = 0x4, scoped, tag = 'scoped memory for forward.1']
    #allocation23 [shape = 'u8[512]{0}', space=vmem, size = 0x400, scoped, tag = 'input window, operand 16, single buffered']
    %24 = vsyncpa [#allocation5], 0
    %25 = vsyncpa [#allocation7], 0
    %26 = vsyncpa [#allocation10], 0
    %27 = vsyncpa [#allocation13], 0
    %28 = vsyncpa [#allocation16], 0
    %29 = vsyncpa [#allocation19], 0
    %30 = vsyncpa [#allocation22], 0
    // Predicated region
    $region2: #{forward.1} parent=1 // pred_check
      _
    $region3: #{forward.1} parent=1 // pred_check_branch
      %32 = sbr.rel (0) target = $region5
    $region4: #{forward.1} parent=1 // pred_region
      _
    $region5: #{forward.1} parent=1 // pred_fallthru
      _
    // Predicated region
    $region6: #{forward.1} parent=1 // pred_check
      _
    $region7: #{forward.1} parent=1 // pred_check_branch
      %34 = sbr.rel (0) target = $region9
    $region8: #{forward.1} parent=1 // pred_region
      _
    $region9: #{forward.1} parent=1 // pred_fallthru
      _
    // Predicated region
    $region10: #{forward.1} parent=1 // pred_check
      _
    $region11: #{forward.1} parent=1 // pred_check_branch
      %36 = sbr.rel (0) target = $region13
    $region12: #{forward.1} parent=1 // pred_region
      _
    $region13: #{forward.1} parent=1 // pred_fallthru
      _
    // Predicated region
    $region14: #{forward.1} parent=1 // pred_check
      _
    $region15: #{forward.1} parent=1 // pred_check_branch
      %38 = sbr.rel (0) target = $region17
    $region16: #{forward.1} parent=1 // pred_region
      %40 = vsyncadd [#allocation5], 0
      %s41 = sshll.u32 %s3, 4
      %s42 = int_to_ptr.hbm [resolvable:$true] %s41
      %s43 = sshll.u32 [#allocation4], 4
      %s44 = int_to_ptr.vmem [resolvable:$true] %s43
      %49 = dma.hbm_to_vmem [thread:$0]  %s42, 128, %s44, [#allocation5], 64, 64, 4
    $region17: #{forward.1} parent=1 // pred_fallthru
      _
    // Predicated region
    $region18: #{forward.1} parent=1 // pred_check
      _
    $region19: #{forward.1} parent=1 // pred_check_branch
      %51 = sbr.rel (0) target = $region21
    $region20: #{forward.1} parent=1 // pred_region
      _
    $region21: #{forward.1} parent=1 // pred_fallthru
      _
    // Predicated region
    $region22: #{forward.1} parent=1 // pred_check
      _
    $region23: #{forward.1} parent=1 // pred_check_branch
      %53 = sbr.rel (0) target = $region25
    $region24: #{forward.1} parent=1 // pred_region
      %55 = vsyncadd [#allocation7], 0
      %s56 = sshll.u32 %s5, 4
      %s57 = int_to_ptr.hbm [resolvable:$true] %s56
      %s58 = sshll.u32 [#allocation6], 4
      %s59 = int_to_ptr.vmem [resolvable:$true] %s58
      %64 = dma.hbm_to_vmem [thread:$0]  %s57, 2048, %s59, [#allocation7], 64, 64, 4
    $region25: #{forward.1} parent=1 // pred_fallthru
      _
    // Predicated region
    $region26: #{forward.1} parent=1 // pred_check
      _
    $region27: #{forward.1} parent=1 // pred_check_branch
      %66 = sbr.rel (0) target = $region29
    $region28: #{forward.1} parent=1 // pred_region
      %68 = vsyncadd [#allocation7], 0
      %s70 = sshll.u32 %s6, 4
      %s71 = int_to_ptr.hbm [resolvable:$true] %s70
      %s72 = sshll.u32 [#allocation8], 4
      %s73 = int_to_ptr.vmem [resolvable:$true] %s72
      %75 = dma.hbm_to_vmem [thread:$0]  %s71, 16, %s73, [#allocation7]
    $region29: #{forward.1} parent=1 // pred_fallthru
      _
    // Predicated region
    $region30: #{forward.1} parent=1 // pred_check
      _
    $region31: #{forward.1} parent=1 // pred_check_branch
      %77 = sbr.rel (0) target = $region33
    $region32: #{forward.1} parent=1 // pred_region
      %79 = vsyncadd [#allocation10], 0
      %s80 = sshll.u32 %s7, 4
      %s81 = int_to_ptr.hbm [resolvable:$true] %s80
      %s82 = sshll.u32 [#allocation9], 4
      %s83 = int_to_ptr.vmem [resolvable:$true] %s82
      %88 = dma.hbm_to_vmem [thread:$0]  %s81, 2048, %s83, [#allocation10], 64, 64, 4
    $region33: #{forward.1} parent=1 // pred_fallthru
      _
    // Predicated region
    $region34: #{forward.1} parent=1 // pred_check
      _
    $region35: #{forward.1} parent=1 // pred_check_branch
      %90 = sbr.rel (0) target = $region37
    $region36: #{forward.1} parent=1 // pred_region
      %92 = vsyncadd [#allocation10], 0
      %s94 = sshll.u32 %s8, 4
      %s95 = int_to_ptr.hbm [resolvable:$true] %s94
      %s96 = sshll.u32 [#allocation11], 4
      %s97 = int_to_ptr.vmem [resolvable:$true] %s96
      %99 = dma.hbm_to_vmem [thread:$0]  %s95, 16, %s97, [#allocation10]
    $region37: #{forward.1} parent=1 // pred_fallthru
      _
    // Predicated region
    $region38: #{forward.1} parent=1 // pred_check
      _
    $region39: #{forward.1} parent=1 // pred_check_branch
      %101 = sbr.rel (0) target = $region41
    $region40: #{forward.1} parent=1 // pred_region
      %103 = vsyncadd [#allocation13], 0
      %s104 = sshll.u32 %s9, 4
      %s105 = int_to_ptr.hbm [resolvable:$true] %s104
      %s106 = sshll.u32 [#allocation12], 4
      %s107 = int_to_ptr.vmem [resolvable:$true] %s106
      %112 = dma.hbm_to_vmem [thread:$0]  %s105, 2048, %s107, [#allocation13], 64, 64, 4
    $region41: #{forward.1} parent=1 // pred_fallthru
      _
    // Predicated region
    $region42: #{forward.1} parent=1 // pred_check
      _
    $region43: #{forward.1} parent=1 // pred_check_branch
      %114 = sbr.rel (0) target = $region45
    $region44: #{forward.1} parent=1 // pred_region
      %116 = vsyncadd [#allocation13], 0
      %s118 = sshll.u32 %s10, 4
      %s119 = int_to_ptr.hbm [resolvable:$true] %s118
      %s120 = sshll.u32 [#allocation14], 4
      %s121 = int_to_ptr.vmem [resolvable:$true] %s120
      %123 = dma.hbm_to_vmem [thread:$0]  %s119, 16, %s121, [#allocation13]
    $region45: #{forward.1} parent=1 // pred_fallthru
      _
    // Predicated region
    $region46: #{forward.1} parent=1 // pred_check
      _
    $region47: #{forward.1} parent=1 // pred_check_branch
      %125 = sbr.rel (0) target = $region49
    $region48: #{forward.1} parent=1 // pred_region
      %127 = vsyncadd [#allocation16], 0
      %s128 = sshll.u32 %s11, 4
      %s129 = int_to_ptr.hbm [resolvable:$true] %s128
      %s130 = sshll.u32 [#allocation15], 4
      %s131 = int_to_ptr.vmem [resolvable:$true] %s130
      %136 = dma.hbm_to_vmem [thread:$0]  %s129, 2048, %s131, [#allocation16], 64, 64, 4
    $region49: #{forward.1} parent=1 // pred_fallthru
      _
    // Predicated region
    $region50: #{forward.1} parent=1 // pred_check
      _
    $region51: #{forward.1} parent=1 // pred_check_branch
      %138 = sbr.rel (0) target = $region53
    $region52: #{forward.1} parent=1 // pred_region
      %140 = vsyncadd [#allocation16], 0
      %s142 = sshll.u32 %s12, 4
      %s143 = int_to_ptr.hbm [resolvable:$true] %s142
      %s144 = sshll.u32 [#allocation17], 4
      %s145 = int_to_ptr.vmem [resolvable:$true] %s144
      %147 = dma.hbm_to_vmem [thread:$0]  %s143, 16, %s145, [#allocation16]
    $region53: #{forward.1} parent=1 // pred_fallthru
      _
    // Predicated region
    $region54: #{forward.1} parent=1 // pred_check
      _
    $region55: #{forward.1} parent=1 // pred_check_branch
      %149 = sbr.rel (0) target = $region57
    $region56: #{forward.1} parent=1 // pred_region
      %151 = vsyncadd [#allocation19], 0
      %s152 = sshll.u32 %s13, 4
      %s153 = int_to_ptr.hbm [resolvable:$true] %s152
      %s154 = sshll.u32 [#allocation18], 4
      %s155 = int_to_ptr.vmem [resolvable:$true] %s154
      %160 = dma.hbm_to_vmem [thread:$0]  %s153, 2048, %s155, [#allocation19], 64, 64, 4
    $region57: #{forward.1} parent=1 // pred_fallthru
      _
    // Predicated region
    $region58: #{forward.1} parent=1 // pred_check
      _
    $region59: #{forward.1} parent=1 // pred_check_branch
      %162 = sbr.rel (0) target = $region61
    $region60: #{forward.1} parent=1 // pred_region
      %164 = vsyncadd [#allocation19], 0
      %s166 = sshll.u32 %s14, 4
      %s167 = int_to_ptr.hbm [resolvable:$true] %s166
      %s168 = sshll.u32 [#allocation20], 4
      %s169 = int_to_ptr.vmem [resolvable:$true] %s168
      %171 = dma.hbm_to_vmem [thread:$0]  %s167, 16, %s169, [#allocation19]
    $region61: #{forward.1} parent=1 // pred_fallthru
      _
    // Predicated region
    $region62: #{forward.1} parent=1 // pred_check
      _
    $region63: #{forward.1} parent=1 // pred_check_branch
      %173 = sbr.rel (0) target = $region65
    $region64: #{forward.1} parent=1 // pred_region
      %175 = vsyncadd [#allocation22], 0
      %s176 = sshll.u32 %s15, 4
      %s177 = int_to_ptr.hbm [resolvable:$true] %s176
      %s178 = sshll.u32 [#allocation21], 4
      %s179 = int_to_ptr.vmem [resolvable:$true] %s178
      %184 = dma.hbm_to_vmem [thread:$0]  %s177, 2048, %s179, [#allocation22], 64, 64, 4
    $region65: #{forward.1} parent=1 // pred_fallthru
      _
    // Predicated region
    $region66: #{forward.1} parent=1 // pred_check
      _
    $region67: #{forward.1} parent=1 // pred_check_branch
      %186 = sbr.rel (0) target = $region69
    $region68: #{forward.1} parent=1 // pred_region
      %188 = vsyncadd [#allocation22], 0
      %s190 = sshll.u32 %s16, 4
      %s191 = int_to_ptr.hbm [resolvable:$true] %s190
      %s192 = sshll.u32 [#allocation23], 4
      %s193 = int_to_ptr.vmem [resolvable:$true] %s192
      %195 = dma.hbm_to_vmem [thread:$0]  %s191, 16, %s193, [#allocation22]
    $region69: #{forward.1} parent=1 // pred_fallthru
      _
    // Predicated region
    $region70: #{forward.1} parent=1 // pred_check
      _
    $region71: #{forward.1} parent=1 // pred_check_branch
      %197 = sbr.rel (0) target = $region73
    $region72: #{forward.1} parent=1 // pred_region
      %199 = dma.done [#allocation5], 128
    $region73: #{forward.1} parent=1 // pred_fallthru
      _
    // Predicated region
    $region74: #{forward.1} parent=1 // pred_check
      _
    $region75: #{forward.1} parent=1 // pred_check_branch
      %201 = sbr.rel (0) target = $region77
    $region76: #{forward.1} parent=1 // pred_region
      %203 = dma.done [#allocation7], 2048
    $region77: #{forward.1} parent=1 // pred_fallthru
      _
    // Predicated region
    $region78: #{forward.1} parent=1 // pred_check
      _
    $region79: #{forward.1} parent=1 // pred_check_branch
      %205 = sbr.rel (0) target = $region81
    $region80: #{forward.1} parent=1 // pred_region
      %207 = dma.done [#allocation7], 16
    $region81: #{forward.1} parent=1 // pred_fallthru
      _
    // Predicated region
    $region82: #{forward.1} parent=1 // pred_check
      _
    $region83: #{forward.1} parent=1 // pred_check_branch
      %209 = sbr.rel (0) target = $region85
    $region84: #{forward.1} parent=1 // pred_region
      %211 = dma.done [#allocation10], 2048
    $region85: #{forward.1} parent=1 // pred_fallthru
      _
    // Predicated region
    $region86: #{forward.1} parent=1 // pred_check
      _
    $region87: #{forward.1} parent=1 // pred_check_branch
      %213 = sbr.rel (0) target = $region89
    $region88: #{forward.1} parent=1 // pred_region
      %215 = dma.done [#allocation10], 16
    $region89: #{forward.1} parent=1 // pred_fallthru
      _
    // Predicated region
    $region90: #{forward.1} parent=1 // pred_check
      _
    $region91: #{forward.1} parent=1 // pred_check_branch
      %217 = sbr.rel (0) target = $region93
    $region92: #{forward.1} parent=1 // pred_region
      %219 = dma.done [#allocation13], 2048
    $region93: #{forward.1} parent=1 // pred_fallthru
      _
    // Predicated region
    $region94: #{forward.1} parent=1 // pred_check
      _
    $region95: #{forward.1} parent=1 // pred_check_branch
      %221 = sbr.rel (0) target = $region97
    $region96: #{forward.1} parent=1 // pred_region
      %223 = dma.done [#allocation13], 16
    $region97: #{forward.1} parent=1 // pred_fallthru
      _
    // Predicated region
    $region98: #{forward.1} parent=1 // pred_check
      _
    $region99: #{forward.1} parent=1 // pred_check_branch
      %225 = sbr.rel (0) target = $region101
    $region100: #{forward.1} parent=1 // pred_region
      %227 = dma.done [#allocation16], 2048
    $region101: #{forward.1} parent=1 // pred_fallthru
      _
    // Predicated region
    $region102: #{forward.1} parent=1 // pred_check
      _
    $region103: #{forward.1} parent=1 // pred_check_branch
      %229 = sbr.rel (0) target = $region105
    $region104: #{forward.1} parent=1 // pred_region
      %231 = dma.done [#allocation16], 16
    $region105: #{forward.1} parent=1 // pred_fallthru
      _
    // Predicated region
    $region106: #{forward.1} parent=1 // pred_check
      _
    $region107: #{forward.1} parent=1 // pred_check_branch
      %233 = sbr.rel (0) target = $region109
    $region108: #{forward.1} parent=1 // pred_region
      %235 = dma.done [#allocation19], 2048
    $region109: #{forward.1} parent=1 // pred_fallthru
      _
    // Predicated region
    $region110: #{forward.1} parent=1 // pred_check
      _
    $region111: #{forward.1} parent=1 // pred_check_branch
      %237 = sbr.rel (0) target = $region113
    $region112: #{forward.1} parent=1 // pred_region
      %239 = dma.done [#allocation19], 16
    $region113: #{forward.1} parent=1 // pred_fallthru
      _
    // Predicated region
    $region114: #{forward.1} parent=1 // pred_check
      _
    $region115: #{forward.1} parent=1 // pred_check_branch
      %241 = sbr.rel (0) target = $region117
    $region116: #{forward.1} parent=1 // pred_region
      %243 = dma.done [#allocation22], 2048
    $region117: #{forward.1} parent=1 // pred_fallthru
      _
    // Predicated region
    $region118: #{forward.1} parent=1 // pred_check
      _
    $region119: #{forward.1} parent=1 // pred_check_branch
      %245 = sbr.rel (0) target = $region121
    $region120: #{forward.1} parent=1 // pred_region
      %247 = dma.done [#allocation22], 16
    $region121: #{forward.1} parent=1 // pred_fallthru
      _
    %v249 = vld [vmem:[#allocation4] sm:$0xf]
    %v250 = vld [vmem:[#allocation4 + $0x4] sm:$0xf]
    %v251 = vld [vmem:[%s4] sm:$0xf]
    %v252 = vld [vmem:[%s4 + $0x4] sm:$0xf]
    %v253 = vld [vmem:[%s4 + $0x8] sm:$0xf]
    %v254 = vld [vmem:[%s0] sm:$0xf]
    %v255 = vld [vmem:[%s0 + $0x4] sm:$0xf]
    %v258 = vunpack.c.l.b16 %v254
    %v259 = vunpack.c.l.b16 %v255
    %v260 = vpack.c.b16 %v259, %v258
    %v263 = vunpack.c.l.b16 %v249
    %v264 = vunpack.c.l.b16 %v250
    %v265 = vpack.c.b16 %v264, %v263
    %vm267 = vcmask 130048
    %v269 = vsel %vm267, %v260, 0
    %271 = vmatpush.bf16.msra.mxu0 0
    %272 = vmatpush.bf16.msra.mxu0 0
    %273 = vmatpush.bf16.msra.mxu0 0
    %274 = vmatpush.bf16.msra.mxu0 0
    %275 = vmatpush.bf16.msra.mxu0 0
    %276 = vmatpush.bf16.msra.mxu0 0
    %277 = vmatpush.bf16.msra.mxu0 0
    %278 = vmatpush.bf16.msra.mxu0 %v265
    %279 = vmatmul.bf16.gmra.mxu0 %v269
    %v280 = vpop.f32.mrf.mxu0
    %v281 = vadd.f32 0.0, %v280
    %v282 = vpop.f32.mrf.mxu0
    %v283 = vadd.f32 0.0, %v282
    %284 = vdwg.mxu0
    %v285 = vpack.c.bf16 %v281, %v281
    %v286 = vpack.c.bf16 %v283, %v283
    %v289 = vunpack.c.l.b16 %v285
    %v290 = vunpack.c.l.b16 %v286
    %v291 = vpack.c.b16 %v290, %v289
    %v293 = vld [vmem:[#allocation6] sm:$0xf]
    %v294 = vld [vmem:[#allocation6 + $0x4] sm:$0xf]
    %v295 = vld [vmem:[#allocation6 + $0x8] sm:$0xf]
    %v296 = vld [vmem:[#allocation6 + $0xc] sm:$0xf]
    %v297 = vld [vmem:[#allocation6 + $0x10] sm:$0xf]
    %v298 = vld [vmem:[#allocation6 + $0x14] sm:$0xf]
    %v299 = vld [vmem:[#allocation6 + $0x18] sm:$0xf]
    %v300 = vld [vmem:[#allocation6 + $0x1c] sm:$0xf]
    %v301 = vld [vmem:[#allocation6 + $0x20] sm:$0xf]
    %v302 = vld [vmem:[#allocation6 + $0x24] sm:$0xf]
    %v303 = vld [vmem:[#allocation6 + $0x28] sm:$0xf]
    %v304 = vld [vmem:[#allocation6 + $0x2c] sm:$0xf]
    %v305 = vld [vmem:[#allocation6 + $0x30] sm:$0xf]
    %v306 = vld [vmem:[#allocation6 + $0x34] sm:$0xf]
    %v307 = vld [vmem:[#allocation6 + $0x38] sm:$0xf]
    %v308 = vld [vmem:[#allocation6 + $0x3c] sm:$0xf]
    %v309 = vld [vmem:[#allocation6 + $0x40] sm:$0xf]
    %v310 = vld [vmem:[#allocation6 + $0x44] sm:$0xf]
    %v311 = vld [vmem:[#allocation6 + $0x48] sm:$0xf]
    %v312 = vld [vmem:[#allocation6 + $0x4c] sm:$0xf]
    %v313 = vld [vmem:[#allocation6 + $0x50] sm:$0xf]
    %v314 = vld [vmem:[#allocation6 + $0x54] sm:$0xf]
    %v315 = vld [vmem:[#allocation6 + $0x58] sm:$0xf]
    %v316 = vld [vmem:[#allocation6 + $0x5c] sm:$0xf]
    %v317 = vld [vmem:[#allocation6 + $0x60] sm:$0xf]
    %v318 = vld [vmem:[#allocation6 + $0x64] sm:$0xf]
    %v319 = vld [vmem:[#allocation6 + $0x68] sm:$0xf]
    %v320 = vld [vmem:[#allocation6 + $0x6c] sm:$0xf]
    %v321 = vld [vmem:[#allocation6 + $0x70] sm:$0xf]
    %v322 = vld [vmem:[#allocation6 + $0x74] sm:$0xf]
    %v323 = vld [vmem:[#allocation6 + $0x78] sm:$0xf]
    %v324 = vld [vmem:[#allocation6 + $0x7c] sm:$0xf]
    %v325 = vld [vmem:[#allocation8] sm:$0x1]
    %v327 = vperm.slane %v325, 0
    %v361 = vunpack.c.l.b16 %v293
    %v362 = vunpack.c.l.b16 %v294
    %v363 = vunpack.c.l.b16 %v295
    %v364 = vunpack.c.l.b16 %v296
    %v365 = vunpack.c.l.b16 %v297
    %v366 = vunpack.c.l.b16 %v298
    %v367 = vunpack.c.l.b16 %v299
    %v368 = vunpack.c.l.b16 %v300
    %v369 = vunpack.c.l.b16 %v301
    %v370 = vunpack.c.l.b16 %v302
    %v371 = vunpack.c.l.b16 %v303
    %v372 = vunpack.c.l.b16 %v304
    %v373 = vunpack.c.l.b16 %v305
    %v374 = vunpack.c.l.b16 %v306
    %v375 = vunpack.c.l.b16 %v307
    %v376 = vunpack.c.l.b16 %v308
    %v377 = vunpack.c.l.b16 %v309
    %v378 = vunpack.c.l.b16 %v310
    %v379 = vunpack.c.l.b16 %v311
    %v380 = vunpack.c.l.b16 %v312
    %v381 = vunpack.c.l.b16 %v313
    %v382 = vunpack.c.l.b16 %v314
    %v383 = vunpack.c.l.b16 %v315
    %v384 = vunpack.c.l.b16 %v316
    %v385 = vunpack.c.l.b16 %v317
    %v386 = vunpack.c.l.b16 %v318
    %v387 = vunpack.c.l.b16 %v319
    %v388 = vunpack.c.l.b16 %v320
    %v389 = vunpack.c.l.b16 %v321
    %v390 = vunpack.c.l.b16 %v322
    %v391 = vunpack.c.l.b16 %v323
    %v392 = vunpack.c.l.b16 %v324
    %v393 = vpack.c.b16 %v362, %v361
    %v394 = vpack.c.b16 %v364, %v363
    %v395 = vpack.c.b16 %v366, %v365
    %v396 = vpack.c.b16 %v368, %v367
    %v397 = vpack.c.b16 %v370, %v369
    %v398 = vpack.c.b16 %v372, %v371
    %v399 = vpack.c.b16 %v374, %v373
    %v400 = vpack.c.b16 %v376, %v375
    %v401 = vpack.c.b16 %v378, %v377
    %v402 = vpack.c.b16 %v380, %v379
    %v403 = vpack.c.b16 %v382, %v381
    %v404 = vpack.c.b16 %v384, %v383
    %v405 = vpack.c.b16 %v386, %v385
    %v406 = vpack.c.b16 %v388, %v387
    %v407 = vpack.c.b16 %v390, %v389
    %v408 = vpack.c.b16 %v392, %v391
    %425 = vmatpush.bf16.msra.mxu0 %v400
    %426 = vmatpush.bf16.msra.mxu0 %v399
    %427 = vmatpush.bf16.msra.mxu0 %v398
    %428 = vmatpush.bf16.msra.mxu0 %v397
    %429 = vmatpush.bf16.msra.mxu0 %v396
    %430 = vmatpush.bf16.msra.mxu0 %v395
    %431 = vmatpush.bf16.msra.mxu0 %v394
    %432 = vmatpush.bf16.msra.mxu0 %v393
    %433 = vmatmul.bf16.gmra.mxu0 %v291
    %v434 = vpop.f32.mrf.mxu0
    %v435 = vadd.f32 %v327, %v434
    %v436 = vpop.f32.mrf.mxu0
    %v437 = vadd.f32 %v327, %v436
    %438 = vdwg.mxu0
    %439 = vmatpush.bf16.msra.mxu0 %v408
    %440 = vmatpush.bf16.msra.mxu0 %v407
    %441 = vmatpush.bf16.msra.mxu0 %v406
    %442 = vmatpush.bf16.msra.mxu0 %v405
    %443 = vmatpush.bf16.msra.mxu0 %v404
    %444 = vmatpush.bf16.msra.mxu0 %v403
    %445 = vmatpush.bf16.msra.mxu0 %v402
    %446 = vmatpush.bf16.msra.mxu0 %v401
    %447 = vmatmul.bf16.gmra.mxu0 %v265
    %v448 = vpop.f32.mrf.mxu0
    %v449 = vadd.f32 %v435, %v448
    %v450 = vpop.f32.mrf.mxu0
    %v451 = vadd.f32 %v437, %v450
    %452 = vdwg.mxu0
    %v453 = vmul.f32 %v449, %v449
    %v454 = vmul.f32 %v451, %v451
    %455 = vadd.xlane.f32.xlu0 %v453
    %v456 = vpop.xlane.xlu0 %455
    %457 = vadd.xlane.f32.xlu0 %v454
    %v458 = vpop.xlane.xlu0 %457
    %v459 = vmax.f32 %v456, 1e-24
    %v460 = vmax.f32 %v458, 1e-24
    %v461 = vrsqrt.pop %v459
    %v462 = vmul.f32 %v461, %v459
    %v463 = vmul.f32 %v462, %v461
    %v464 = vmul.f32 0.5, %v463
    %v465 = vsub.f32 1.5, %v464
    %v466 = vmul.f32 %v461, %v465
    %vm467 = vweird.f32 %v459
    %vm468 = vweird.f32 %v461
    %vm469 = vmor %vm467, %vm468
    %v470 = vsel %vm469, %v461, %v466
    %v471 = vrsqrt.pop %v460
    %v472 = vmul.f32 %v471, %v460
    %v473 = vmul.f32 %v472, %v471
    %v474 = vmul.f32 0.5, %v473
    %v475 = vsub.f32 1.5, %v474
    %v476 = vmul.f32 %v471, %v475
    %vm477 = vweird.f32 %v460
    %vm478 = vweird.f32 %v471
    %vm479 = vmor %vm477, %vm478
    %v480 = vsel %vm479, %v471, %v476
    %v481 = vmul.f32 %v449, %v470
    %v482 = vmul.f32 %v451, %v480
    %v483 = vld [vmem:[%s2] sm:$0xf]
    %v484 = vld [vmem:[%s2 + $0x4] sm:$0xf]
    %v487 = vunpack.c.l.b16 %v483
    %v488 = vunpack.c.l.b16 %v484
    %v489 = vpack.c.b16 %v488, %v487
    %v493 = vunpack.c.l.b16 %v251
    %v494 = vunpack.c.l.b16 %v252
    %v495 = vunpack.c.l.b16 %v253
    %v496 = vpack.c.b16 %v494, %v493
    %v497 = vpack.c.b16 %v495, %v495
    %vm499 = vcmask 195584
    %v501 = vsel %vm499, %v489, 0
    %vm503 = vcmask 1043456
    %v505 = vsel %vm503, %v497, 0
    %507 = vmatpush.bf16.msra.mxu0 0
    %508 = vmatpush.bf16.msra.mxu0 0
    %509 = vmatpush.bf16.msra.mxu0 0
    %510 = vmatpush.bf16.msra.mxu0 0
    %511 = vmatpush.bf16.msra.mxu0 0
    %512 = vmatpush.bf16.msra.mxu0 0
    %513 = vmatpush.bf16.msra.mxu0 %v505
    %514 = vmatpush.bf16.msra.mxu0 %v496
    %515 = vmatmul.bf16.gmra.mxu0 %v501
    %v516 = vpop.f32.mrf.mxu0
    %v517 = vadd.f32 0.0, %v516
    %v518 = vpop.f32.mrf.mxu0
    %v519 = vadd.f32 0.0, %v518
    %520 = vdwg.mxu0
    %v521 = vpack.c.bf16 %v517, %v517
    %v522 = vpack.c.bf16 %v519, %v519
    %v525 = vunpack.c.l.b16 %v521
    %v526 = vunpack.c.l.b16 %v522
    %v527 = vpack.c.b16 %v526, %v525
    %v529 = vld [vmem:[#allocation12] sm:$0xf]
    %v530 = vld [vmem:[#allocation12 + $0x4] sm:$0xf]
    %v531 = vld [vmem:[#allocation12 + $0x8] sm:$0xf]
    %v532 = vld [vmem:[#allocation12 + $0xc] sm:$0xf]
    %v533 = vld [vmem:[#allocation12 + $0x10] sm:$0xf]
    %v534 = vld [vmem:[#allocation12 + $0x14] sm:$0xf]
    %v535 = vld [vmem:[#allocation12 + $0x18] sm:$0xf]
    %v536 = vld [vmem:[#allocation12 + $0x1c] sm:$0xf]
    %v537 = vld [vmem:[#allocation12 + $0x20] sm:$0xf]
    %v538 = vld [vmem:[#allocation12 + $0x24] sm:$0xf]
    %v539 = vld [vmem:[#allocation12 + $0x28] sm:$0xf]
    %v540 = vld [vmem:[#allocation12 + $0x2c] sm:$0xf]
    %v541 = vld [vmem:[#allocation12 + $0x30] sm:$0xf]
    %v542 = vld [vmem:[#allocation12 + $0x34] sm:$0xf]
    %v543 = vld [vmem:[#allocation12 + $0x38] sm:$0xf]
    %v544 = vld [vmem:[#allocation12 + $0x3c] sm:$0xf]
    %v545 = vld [vmem:[#allocation12 + $0x40] sm:$0xf]
    %v546 = vld [vmem:[#allocation12 + $0x44] sm:$0xf]
    %v547 = vld [vmem:[#allocation12 + $0x48] sm:$0xf]
    %v548 = vld [vmem:[#allocation12 + $0x4c] sm:$0xf]
    %v549 = vld [vmem:[#allocation12 + $0x50] sm:$0xf]
    %v550 = vld [vmem:[#allocation12 + $0x54] sm:$0xf]
    %v551 = vld [vmem:[#allocation12 + $0x58] sm:$0xf]
    %v552 = vld [vmem:[#allocation12 + $0x5c] sm:$0xf]
    %v553 = vld [vmem:[#allocation12 + $0x60] sm:$0xf]
    %v554 = vld [vmem:[#allocation12 + $0x64] sm:$0xf]
    %v555 = vld [vmem:[#allocation12 + $0x68] sm:$0xf]
    %v556 = vld [vmem:[#allocation12 + $0x6c] sm:$0xf]
    %v557 = vld [vmem:[#allocation12 + $0x70] sm:$0xf]
    %v558 = vld [vmem:[#allocation12 + $0x74] sm:$0xf]
    %v559 = vld [vmem:[#allocation12 + $0x78] sm:$0xf]
    %v560 = vld [vmem:[#allocation12 + $0x7c] sm:$0xf]
    %v561 = vld [vmem:[#allocation14] sm:$0x1]
    %v563 = vperm.slane %v561, 0
    %v597 = vunpack.c.l.b16 %v529
    %v598 = vunpack.c.l.b16 %v530
    %v599 = vunpack.c.l.b16 %v531
    %v600 = vunpack.c.l.b16 %v532
    %v601 = vunpack.c.l.b16 %v533
    %v602 = vunpack.c.l.b16 %v534
    %v603 = vunpack.c.l.b16 %v535
    %v604 = vunpack.c.l.b16 %v536
    %v605 = vunpack.c.l.b16 %v537
    %v606 = vunpack.c.l.b16 %v538
    %v607 = vunpack.c.l.b16 %v539
    %v608 = vunpack.c.l.b16 %v540
    %v609 = vunpack.c.l.b16 %v541
    %v610 = vunpack.c.l.b16 %v542
    %v611 = vunpack.c.l.b16 %v543
    %v612 = vunpack.c.l.b16 %v544
    %v613 = vunpack.c.l.b16 %v545
    %v614 = vunpack.c.l.b16 %v546
    %v615 = vunpack.c.l.b16 %v547
    %v616 = vunpack.c.l.b16 %v548
    %v617 = vunpack.c.l.b16 %v549
    %v618 = vunpack.c.l.b16 %v550
    %v619 = vunpack.c.l.b16 %v551
    %v620 = vunpack.c.l.b16 %v552
    %v621 = vunpack.c.l.b16 %v553
    %v622 = vunpack.c.l.b16 %v554
    %v623 = vunpack.c.l.b16 %v555
    %v624 = vunpack.c.l.b16 %v556
    %v625 = vunpack.c.l.b16 %v557
    %v626 = vunpack.c.l.b16 %v558
    %v627 = vunpack.c.l.b16 %v559
    %v628 = vunpack.c.l.b16 %v560
    %v629 = vpack.c.b16 %v598, %v597
    %v630 = vpack.c.b16 %v600, %v599
    %v631 = vpack.c.b16 %v602, %v601
    %v632 = vpack.c.b16 %v604, %v603
    %v633 = vpack.c.b16 %v606, %v605
    %v634 = vpack.c.b16 %v608, %v607
    %v635 = vpack.c.b16 %v610, %v609
    %v636 = vpack.c.b16 %v612, %v611
    %v637 = vpack.c.b16 %v614, %v613
    %v638 = vpack.c.b16 %v616, %v615
    %v639 = vpack.c.b16 %v618, %v617
    %v640 = vpack.c.b16 %v620, %v619
    %v641 = vpack.c.b16 %v622, %v621
    %v642 = vpack.c.b16 %v624, %v623
    %v643 = vpack.c.b16 %v626, %v625
    %v644 = vpack.c.b16 %v628, %v627
    %661 = vmatpush.bf16.msra.mxu0 %v636
    %662 = vmatpush.bf16.msra.mxu0 %v635
    %663 = vmatpush.bf16.msra.mxu0 %v634
    %664 = vmatpush.bf16.msra.mxu0 %v633
    %665 = vmatpush.bf16.msra.mxu0 %v632
    %666 = vmatpush.bf16.msra.mxu0 %v631
    %667 = vmatpush.bf16.msra.mxu0 %v630
    %668 = vmatpush.bf16.msra.mxu0 %v629
    %669 = vmatmul.bf16.gmra.mxu0 %v527
    %v670 = vpop.f32.mrf.mxu0
    %v671 = vadd.f32 %v563, %v670
    %v672 = vpop.f32.mrf.mxu0
    %v673 = vadd.f32 %v563, %v672
    %674 = vdwg.mxu0
    %675 = vmatpush.bf16.msra.mxu0 %v644
    %676 = vmatpush.bf16.msra.mxu0 %v643
    %677 = vmatpush.bf16.msra.mxu0 %v642
    %678 = vmatpush.bf16.msra.mxu0 %v641
    %679 = vmatpush.bf16.msra.mxu0 %v640
    %680 = vmatpush.bf16.msra.mxu0 %v639
    %681 = vmatpush.bf16.msra.mxu0 %v638
    %682 = vmatpush.bf16.msra.mxu0 %v637
    %683 = vmatmul.bf16.gmra.mxu0 %v265
    %v684 = vpop.f32.mrf.mxu0
    %v685 = vadd.f32 %v671, %v684
    %v686 = vpop.f32.mrf.mxu0
    %v687 = vadd.f32 %v673, %v686
    %688 = vdwg.mxu0
    %v689 = vmul.f32 %v685, %v685
    %v690 = vmul.f32 %v687, %v687
    %691 = vadd.xlane.f32.xlu0 %v689
    %v692 = vpop.xlane.xlu0 %691
    %693 = vadd.xlane.f32.xlu0 %v690
    %v694 = vpop.xlane.xlu0 %693
    %v695 = vmax.f32 %v692, 1e-24
    %v696 = vmax.f32 %v694, 1e-24
    %v697 = vrsqrt.pop %v695
    %v698 = vmul.f32 %v697, %v695
    %v699 = vmul.f32 %v698, %v697
    %v700 = vmul.f32 0.5, %v699
    %v701 = vsub.f32 1.5, %v700
    %v702 = vmul.f32 %v697, %v701
    %vm703 = vweird.f32 %v695
    %vm704 = vweird.f32 %v697
    %vm705 = vmor %vm703, %vm704
    %v706 = vsel %vm705, %v697, %v702
    %v707 = vrsqrt.pop %v696
    %v708 = vmul.f32 %v707, %v696
    %v709 = vmul.f32 %v708, %v707
    %v710 = vmul.f32 0.5, %v709
    %v711 = vsub.f32 1.5, %v710
    %v712 = vmul.f32 %v707, %v711
    %vm713 = vweird.f32 %v696
    %vm714 = vweird.f32 %v707
    %vm715 = vmor %vm713, %vm714
    %v716 = vsel %vm715, %v707, %v712
    %v717 = vmul.f32 %v685, %v706
    %v718 = vmul.f32 %v687, %v716
    %v719 = vadd.f32 %v481, %v717
    %v720 = vadd.f32 %v482, %v718
    %v721 = vmul.f32 %v719, 0.5
    %v722 = vmul.f32 %v720, 0.5
    %v723 = vmax.f32 %v721, 0.0
    %v724 = vmax.f32 %v722, 0.0
    %v725 = vpack.c.bf16 %v723, %v723
    %v726 = vpack.c.bf16 %v724, %v724
    %727 = vst [vmem:[#allocation2] sm:$0xf] %v725
    %728 = vst [vmem:[#allocation2 + $0x4] sm:$0xf] %v726
    %v729 = vld [vmem:[%s1] sm:$0xf]
    %v730 = vld [vmem:[%s1 + $0x4] sm:$0xf]
    %v731 = vld [vmem:[%s1 + $0x8] sm:$0xf]
    %v735 = vunpack.c.l.b16 %v729
    %v736 = vunpack.c.l.b16 %v730
    %v737 = vunpack.c.l.b16 %v731
    %v738 = vpack.c.b16 %v736, %v735
    %v739 = vpack.c.b16 %v737, %v737
    %v741 = vsel %vm267, %v738, 0
    %v744 = vsel %vm267, %v739, 0
    %746 = vmatpush.bf16.msra.mxu0 0
    %747 = vmatpush.bf16.msra.mxu0 0
    %748 = vmatpush.bf16.msra.mxu0 0
    %749 = vmatpush.bf16.msra.mxu0 0
    %750 = vmatpush.bf16.msra.mxu0 0
    %751 = vmatpush.bf16.msra.mxu0 0
    %752 = vmatpush.bf16.msra.mxu0 0
    %753 = vmatpush.bf16.msra.mxu0 %v265
    %754 = vmatmul.bf16.gmra.mxu0 %v741
    %v755 = vpop.f32.mrf.mxu0
    %v756 = vadd.f32 0.0, %v755
    %v757 = vpop.f32.mrf.mxu0
    %v758 = vadd.f32 0.0, %v757
    %759 = vmatmul.bf16.gmra.mxu0 %v744
    %v760 = vpop.f32.mrf.mxu0
    %v761 = vadd.f32 0.0, %v760
    %v762 = vpop.f32.mrf.mxu0
    %763 = vdwg.mxu0
    %v764 = vpack.c.bf16 %v756, %v756
    %v765 = vpack.c.bf16 %v758, %v758
    %v766 = vpack.c.bf16 %v761, %v761
    %v770 = vunpack.c.l.b16 %v764
    %v771 = vunpack.c.l.b16 %v765
    %v772 = vunpack.c.l.b16 %v766
    %v773 = vpack.c.b16 %v771, %v770
    %v774 = vpack.c.b16 %v772, %v772
    %v778 = vld [vmem:[#allocation9] sm:$0xf]
    %v779 = vld [vmem:[#allocation9 + $0x4] sm:$0xf]
    %v780 = vld [vmem:[#allocation9 + $0x8] sm:$0xf]
    %v781 = vld [vmem:[#allocation9 + $0xc] sm:$0xf]
    %v782 = vld [vmem:[#allocation9 + $0x10] sm:$0xf]
    %v783 = vld [vmem:[#allocation9 + $0x14] sm:$0xf]
    %v784 = vld [vmem:[#allocation9 + $0x18] sm:$0xf]
    %v785 = vld [vmem:[#allocation9 + $0x1c] sm:$0xf]
    %v786 = vld [vmem:[#allocation9 + $0x20] sm:$0xf]
    %v787 = vld [vmem:[#allocation9 + $0x24] sm:$0xf]
    %v788 = vld [vmem:[#allocation9 + $0x28] sm:$0xf]
    %v789 = vld [vmem:[#allocation9 + $0x2c] sm:$0xf]
    %v790 = vld [vmem:[#allocation9 + $0x30] sm:$0xf]
    %v791 = vld [vmem:[#allocation9 + $0x34] sm:$0xf]
    %v792 = vld [vmem:[#allocation9 + $0x38] sm:$0xf]
    %v793 = vld [vmem:[#allocation9 + $0x3c] sm:$0xf]
    %v794 = vld [vmem:[#allocation9 + $0x40] sm:$0xf]
    %v795 = vld [vmem:[#allocation9 + $0x44] sm:$0xf]
    %v796 = vld [vmem:[#allocation9 + $0x48] sm:$0xf]
    %v797 = vld [vmem:[#allocation9 + $0x4c] sm:$0xf]
    %v798 = vld [vmem:[#allocation9 + $0x50] sm:$0xf]
    %v799 = vld [vmem:[#allocation9 + $0x54] sm:$0xf]
    %v800 = vld [vmem:[#allocation9 + $0x58] sm:$0xf]
    %v801 = vld [vmem:[#allocation9 + $0x5c] sm:$0xf]
    %v802 = vld [vmem:[#allocation9 + $0x60] sm:$0xf]
    %v803 = vld [vmem:[#allocation9 + $0x64] sm:$0xf]
    %v804 = vld [vmem:[#allocation9 + $0x68] sm:$0xf]
    %v805 = vld [vmem:[#allocation9 + $0x6c] sm:$0xf]
    %v806 = vld [vmem:[#allocation9 + $0x70] sm:$0xf]
    %v807 = vld [vmem:[#allocation9 + $0x74] sm:$0xf]
    %v808 = vld [vmem:[#allocation9 + $0x78] sm:$0xf]
    %v809 = vld [vmem:[#allocation9 + $0x7c] sm:$0xf]
    %v810 = vld [vmem:[#allocation11] sm:$0x1]
    %v812 = vperm.slane %v810, 0
    %v846 = vunpack.c.l.b16 %v778
    %v847 = vunpack.c.l.b16 %v779
    %v848 = vunpack.c.l.b16 %v780
    %v849 = vunpack.c.l.b16 %v781
    %v850 = vunpack.c.l.b16 %v782
    %v851 = vunpack.c.l.b16 %v783
    %v852 = vunpack.c.l.b16 %v784
    %v853 = vunpack.c.l.b16 %v785
    %v854 = vunpack.c.l.b16 %v786
    %v855 = vunpack.c.l.b16 %v787
    %v856 = vunpack.c.l.b16 %v788
    %v857 = vunpack.c.l.b16 %v789
    %v858 = vunpack.c.l.b16 %v790
    %v859 = vunpack.c.l.b16 %v791
    %v860 = vunpack.c.l.b16 %v792
    %v861 = vunpack.c.l.b16 %v793
    %v862 = vunpack.c.l.b16 %v794
    %v863 = vunpack.c.l.b16 %v795
    %v864 = vunpack.c.l.b16 %v796
    %v865 = vunpack.c.l.b16 %v797
    %v866 = vunpack.c.l.b16 %v798
    %v867 = vunpack.c.l.b16 %v799
    %v868 = vunpack.c.l.b16 %v800
    %v869 = vunpack.c.l.b16 %v801
    %v870 = vunpack.c.l.b16 %v802
    %v871 = vunpack.c.l.b16 %v803
    %v872 = vunpack.c.l.b16 %v804
    %v873 = vunpack.c.l.b16 %v805
    %v874 = vunpack.c.l.b16 %v806
    %v875 = vunpack.c.l.b16 %v807
    %v876 = vunpack.c.l.b16 %v808
    %v877 = vunpack.c.l.b16 %v809
    %v878 = vpack.c.b16 %v847, %v846
    %v879 = vpack.c.b16 %v849, %v848
    %v880 = vpack.c.b16 %v851, %v850
    %v881 = vpack.c.b16 %v853, %v852
    %v882 = vpack.c.b16 %v855, %v854
    %v883 = vpack.c.b16 %v857, %v856
    %v884 = vpack.c.b16 %v859, %v858
    %v885 = vpack.c.b16 %v861, %v860
    %v886 = vpack.c.b16 %v863, %v862
    %v887 = vpack.c.b16 %v865, %v864
    %v888 = vpack.c.b16 %v867, %v866
    %v889 = vpack.c.b16 %v869, %v868
    %v890 = vpack.c.b16 %v871, %v870
    %v891 = vpack.c.b16 %v873, %v872
    %v892 = vpack.c.b16 %v875, %v874
    %v893 = vpack.c.b16 %v877, %v876
    %910 = vmatpush.bf16.msra.mxu0 %v885
    %911 = vmatpush.bf16.msra.mxu0 %v884
    %912 = vmatpush.bf16.msra.mxu0 %v883
    %913 = vmatpush.bf16.msra.mxu0 %v882
    %914 = vmatpush.bf16.msra.mxu0 %v881
    %915 = vmatpush.bf16.msra.mxu0 %v880
    %916 = vmatpush.bf16.msra.mxu0 %v879
    %917 = vmatpush.bf16.msra.mxu0 %v878
    %918 = vmatmul.bf16.gmra.mxu0 %v773
    %v919 = vpop.f32.mrf.mxu0
    %v920 = vadd.f32 %v812, %v919
    %v921 = vpop.f32.mrf.mxu0
    %v922 = vadd.f32 %v812, %v921
    %923 = vmatmul.bf16.gmra.mxu0 %v774
    %v924 = vpop.f32.mrf.mxu0
    %v925 = vadd.f32 %v812, %v924
    %v926 = vpop.f32.mrf.mxu0
    %927 = vdwg.mxu0
    %928 = vmatpush.bf16.msra.mxu0 %v893
    %929 = vmatpush.bf16.msra.mxu0 %v892
    %930 = vmatpush.bf16.msra.mxu0 %v891
    %931 = vmatpush.bf16.msra.mxu0 %v890
    %932 = vmatpush.bf16.msra.mxu0 %v889
    %933 = vmatpush.bf16.msra.mxu0 %v888
    %934 = vmatpush.bf16.msra.mxu0 %v887
    %935 = vmatpush.bf16.msra.mxu0 %v886
    %936 = vmatmul.bf16.gmra.mxu0 %v496
    %v937 = vpop.f32.mrf.mxu0
    %v938 = vadd.f32 %v920, %v937
    %v939 = vpop.f32.mrf.mxu0
    %v940 = vadd.f32 %v922, %v939
    %941 = vmatmul.bf16.gmra.mxu0 %v497
    %v942 = vpop.f32.mrf.mxu0
    %v943 = vadd.f32 %v925, %v942
    %v944 = vpop.f32.mrf.mxu0
    %945 = vdwg.mxu0
    %v946 = vmul.f32 %v938, %v938
    %v947 = vmul.f32 %v940, %v940
    %v948 = vmul.f32 %v943, %v943
    %949 = vadd.xlane.f32.xlu0 %v946
    %v950 = vpop.xlane.xlu0 %949
    %951 = vadd.xlane.f32.xlu0 %v947
    %v952 = vpop.xlane.xlu0 %951
    %953 = vadd.xlane.f32.xlu0 %v948
    %v954 = vpop.xlane.xlu0 %953
    %v955 = vmax.f32 %v950, 1e-24
    %v956 = vmax.f32 %v952, 1e-24
    %v957 = vmax.f32 %v954, 1e-24
    %v958 = vrsqrt.pop %v955
    %v959 = vmul.f32 %v958, %v955
    %v960 = vmul.f32 %v959, %v958
    %v961 = vmul.f32 0.5, %v960
    %v962 = vsub.f32 1.5, %v961
    %v963 = vmul.f32 %v958, %v962
    %vm964 = vweird.f32 %v955
    %vm965 = vweird.f32 %v958
    %vm966 = vmor %vm964, %vm965
    %v967 = vsel %vm966, %v958, %v963
    %v968 = vrsqrt.pop %v956
    %v969 = vmul.f32 %v968, %v956
    %v970 = vmul.f32 %v969, %v968
    %v971 = vmul.f32 0.5, %v970
    %v972 = vsub.f32 1.5, %v971
    %v973 = vmul.f32 %v968, %v972
    %vm974 = vweird.f32 %v956
    %vm975 = vweird.f32 %v968
    %vm976 = vmor %vm974, %vm975
    %v977 = vsel %vm976, %v968, %v973
    %v978 = vrsqrt.pop %v957
    %v979 = vmul.f32 %v978, %v957
    %v980 = vmul.f32 %v979, %v978
    %v981 = vmul.f32 0.5, %v980
    %v982 = vsub.f32 1.5, %v981
    %v983 = vmul.f32 %v978, %v982
    %vm984 = vweird.f32 %v957
    %vm985 = vweird.f32 %v978
    %vm986 = vmor %vm984, %vm985
    %v987 = vsel %vm986, %v978, %v983
    %v988 = vmul.f32 %v938, %v967
    %v989 = vmul.f32 %v940, %v977
    %v990 = vmul.f32 %v943, %v987
    %v991 = vmax.f32 %v988, 0.0
    %v992 = vmax.f32 %v989, 0.0
    %v993 = vmax.f32 %v990, 0.0
    %v994 = vpack.c.bf16 %v991, %v991
    %v995 = vpack.c.bf16 %v992, %v992
    %v996 = vpack.c.bf16 %v993, %v993
    %997 = vst [vmem:[#allocation3] sm:$0xf] %v994
    %998 = vst [vmem:[#allocation3 + $0x4] sm:$0xf] %v995
    %999 = vst [vmem:[#allocation3 + $0x8] sm:$0xf] %v996
    %v1000 = vld [vmem:[#allocation2] sm:$0xf]
    %v1001 = vld [vmem:[#allocation2 + $0x4] sm:$0xf]
    %v1002 = vld [vmem:[#allocation3] sm:$0xf]
    %v1003 = vld [vmem:[#allocation3 + $0x4] sm:$0xf]
    %v1004 = vld [vmem:[#allocation3 + $0x8] sm:$0xf]
    %v1005 = vld [vmem:[%s0] sm:$0xf]
    %v1006 = vld [vmem:[%s0 + $0x4] sm:$0xf]
    %v1009 = vunpack.c.l.b16 %v1005
    %v1010 = vunpack.c.l.b16 %v1006
    %v1011 = vpack.c.b16 %v1010, %v1009
    %v1014 = vunpack.c.l.b16 %v1000
    %v1015 = vunpack.c.l.b16 %v1001
    %v1016 = vpack.c.b16 %v1015, %v1014
    %v1019 = vsel %vm267, %v1011, 0
    %1021 = vmatpush.bf16.msra.mxu0 0
    %1022 = vmatpush.bf16.msra.mxu0 0
    %1023 = vmatpush.bf16.msra.mxu0 0
    %1024 = vmatpush.bf16.msra.mxu0 0
    %1025 = vmatpush.bf16.msra.mxu0 0
    %1026 = vmatpush.bf16.msra.mxu0 0
    %1027 = vmatpush.bf16.msra.mxu0 0
    %1028 = vmatpush.bf16.msra.mxu0 %v1016
    %1029 = vmatmul.bf16.gmra.mxu0 %v1019
    %v1030 = vpop.f32.mrf.mxu0
    %v1031 = vadd.f32 0.0, %v1030
    %v1032 = vpop.f32.mrf.mxu0
    %v1033 = vadd.f32 0.0, %v1032
    %1034 = vdwg.mxu0
    %v1035 = vpack.c.bf16 %v1031, %v1031
    %v1036 = vpack.c.bf16 %v1033, %v1033
    %v1039 = vunpack.c.l.b16 %v1035
    %v1040 = vunpack.c.l.b16 %v1036
    %v1041 = vpack.c.b16 %v1040, %v1039
    %v1043 = vld [vmem:[#allocation15] sm:$0xf]
    %v1044 = vld [vmem:[#allocation15 + $0x4] sm:$0xf]
    %v1045 = vld [vmem:[#allocation15 + $0x8] sm:$0xf]
    %v1046 = vld [vmem:[#allocation15 + $0xc] sm:$0xf]
    %v1047 = vld [vmem:[#allocation15 + $0x10] sm:$0xf]
    %v1048 = vld [vmem:[#allocation15 + $0x14] sm:$0xf]
    %v1049 = vld [vmem:[#allocation15 + $0x18] sm:$0xf]
    %v1050 = vld [vmem:[#allocation15 + $0x1c] sm:$0xf]
    %v1051 = vld [vmem:[#allocation15 + $0x20] sm:$0xf]
    %v1052 = vld [vmem:[#allocation15 + $0x24] sm:$0xf]
    %v1053 = vld [vmem:[#allocation15 + $0x28] sm:$0xf]
    %v1054 = vld [vmem:[#allocation15 + $0x2c] sm:$0xf]
    %v1055 = vld [vmem:[#allocation15 + $0x30] sm:$0xf]
    %v1056 = vld [vmem:[#allocation15 + $0x34] sm:$0xf]
    %v1057 = vld [vmem:[#allocation15 + $0x38] sm:$0xf]
    %v1058 = vld [vmem:[#allocation15 + $0x3c] sm:$0xf]
    %v1059 = vld [vmem:[#allocation15 + $0x40] sm:$0xf]
    %v1060 = vld [vmem:[#allocation15 + $0x44] sm:$0xf]
    %v1061 = vld [vmem:[#allocation15 + $0x48] sm:$0xf]
    %v1062 = vld [vmem:[#allocation15 + $0x4c] sm:$0xf]
    %v1063 = vld [vmem:[#allocation15 + $0x50] sm:$0xf]
    %v1064 = vld [vmem:[#allocation15 + $0x54] sm:$0xf]
    %v1065 = vld [vmem:[#allocation15 + $0x58] sm:$0xf]
    %v1066 = vld [vmem:[#allocation15 + $0x5c] sm:$0xf]
    %v1067 = vld [vmem:[#allocation15 + $0x60] sm:$0xf]
    %v1068 = vld [vmem:[#allocation15 + $0x64] sm:$0xf]
    %v1069 = vld [vmem:[#allocation15 + $0x68] sm:$0xf]
    %v1070 = vld [vmem:[#allocation15 + $0x6c] sm:$0xf]
    %v1071 = vld [vmem:[#allocation15 + $0x70] sm:$0xf]
    %v1072 = vld [vmem:[#allocation15 + $0x74] sm:$0xf]
    %v1073 = vld [vmem:[#allocation15 + $0x78] sm:$0xf]
    %v1074 = vld [vmem:[#allocation15 + $0x7c] sm:$0xf]
    %v1075 = vld [vmem:[#allocation17] sm:$0x1]
    %v1077 = vperm.slane %v1075, 0
    %v1111 = vunpack.c.l.b16 %v1043
    %v1112 = vunpack.c.l.b16 %v1044
    %v1113 = vunpack.c.l.b16 %v1045
    %v1114 = vunpack.c.l.b16 %v1046
    %v1115 = vunpack.c.l.b16 %v1047
    %v1116 = vunpack.c.l.b16 %v1048
    %v1117 = vunpack.c.l.b16 %v1049
    %v1118 = vunpack.c.l.b16 %v1050
    %v1119 = vunpack.c.l.b16 %v1051
    %v1120 = vunpack.c.l.b16 %v1052
    %v1121 = vunpack.c.l.b16 %v1053
    %v1122 = vunpack.c.l.b16 %v1054
    %v1123 = vunpack.c.l.b16 %v1055
    %v1124 = vunpack.c.l.b16 %v1056
    %v1125 = vunpack.c.l.b16 %v1057
    %v1126 = vunpack.c.l.b16 %v1058
    %v1127 = vunpack.c.l.b16 %v1059
    %v1128 = vunpack.c.l.b16 %v1060
    %v1129 = vunpack.c.l.b16 %v1061
    %v1130 = vunpack.c.l.b16 %v1062
    %v1131 = vunpack.c.l.b16 %v1063
    %v1132 = vunpack.c.l.b16 %v1064
    %v1133 = vunpack.c.l.b16 %v1065
    %v1134 = vunpack.c.l.b16 %v1066
    %v1135 = vunpack.c.l.b16 %v1067
    %v1136 = vunpack.c.l.b16 %v1068
    %v1137 = vunpack.c.l.b16 %v1069
    %v1138 = vunpack.c.l.b16 %v1070
    %v1139 = vunpack.c.l.b16 %v1071
    %v1140 = vunpack.c.l.b16 %v1072
    %v1141 = vunpack.c.l.b16 %v1073
    %v1142 = vunpack.c.l.b16 %v1074
    %v1143 = vpack.c.b16 %v1112, %v1111
    %v1144 = vpack.c.b16 %v1114, %v1113
    %v1145 = vpack.c.b16 %v1116, %v1115
    %v1146 = vpack.c.b16 %v1118, %v1117
    %v1147 = vpack.c.b16 %v1120, %v1119
    %v1148 = vpack.c.b16 %v1122, %v1121
    %v1149 = vpack.c.b16 %v1124, %v1123
    %v1150 = vpack.c.b16 %v1126, %v1125
    %v1151 = vpack.c.b16 %v1128, %v1127
    %v1152 = vpack.c.b16 %v1130, %v1129
    %v1153 = vpack.c.b16 %v1132, %v1131
    %v1154 = vpack.c.b16 %v1134, %v1133
    %v1155 = vpack.c.b16 %v1136, %v1135
    %v1156 = vpack.c.b16 %v1138, %v1137
    %v1157 = vpack.c.b16 %v1140, %v1139
    %v1158 = vpack.c.b16 %v1142, %v1141
    %1175 = vmatpush.bf16.msra.mxu0 %v1150
    %1176 = vmatpush.bf16.msra.mxu0 %v1149
    %1177 = vmatpush.bf16.msra.mxu0 %v1148
    %1178 = vmatpush.bf16.msra.mxu0 %v1147
    %1179 = vmatpush.bf16.msra.mxu0 %v1146
    %1180 = vmatpush.bf16.msra.mxu0 %v1145
    %1181 = vmatpush.bf16.msra.mxu0 %v1144
    %1182 = vmatpush.bf16.msra.mxu0 %v1143
    %1183 = vmatmul.bf16.gmra.mxu0 %v1041
    %v1184 = vpop.f32.mrf.mxu0
    %v1185 = vadd.f32 %v1077, %v1184
    %v1186 = vpop.f32.mrf.mxu0
    %v1187 = vadd.f32 %v1077, %v1186
    %1188 = vdwg.mxu0
    %1189 = vmatpush.bf16.msra.mxu0 %v1158
    %1190 = vmatpush.bf16.msra.mxu0 %v1157
    %1191 = vmatpush.bf16.msra.mxu0 %v1156
    %1192 = vmatpush.bf16.msra.mxu0 %v1155
    %1193 = vmatpush.bf16.msra.mxu0 %v1154
    %1194 = vmatpush.bf16.msra.mxu0 %v1153
    %1195 = vmatpush.bf16.msra.mxu0 %v1152
    %1196 = vmatpush.bf16.msra.mxu0 %v1151
    %1197 = vmatmul.bf16.gmra.mxu0 %v1016
    %v1198 = vpop.f32.mrf.mxu0
    %v1199 = vadd.f32 %v1185, %v1198
    %v1200 = vpop.f32.mrf.mxu0
    %v1201 = vadd.f32 %v1187, %v1200
    %1202 = vdwg.mxu0
    %v1203 = vmul.f32 %v1199, %v1199
    %v1204 = vmul.f32 %v1201, %v1201
    %1205 = vadd.xlane.f32.xlu0 %v1203
    %v1206 = vpop.xlane.xlu0 %1205
    %1207 = vadd.xlane.f32.xlu0 %v1204
    %v1208 = vpop.xlane.xlu0 %1207
    %v1209 = vmax.f32 %v1206, 1e-24
    %v1210 = vmax.f32 %v1208, 1e-24
    %v1211 = vrsqrt.pop %v1209
    %v1212 = vmul.f32 %v1211, %v1209
    %v1213 = vmul.f32 %v1212, %v1211
    %v1214 = vmul.f32 0.5, %v1213
    %v1215 = vsub.f32 1.5, %v1214
    %v1216 = vmul.f32 %v1211, %v1215
    %vm1217 = vweird.f32 %v1209
    %vm1218 = vweird.f32 %v1211
    %vm1219 = vmor %vm1217, %vm1218
    %v1220 = vsel %vm1219, %v1211, %v1216
    %v1221 = vrsqrt.pop %v1210
    %v1222 = vmul.f32 %v1221, %v1210
    %v1223 = vmul.f32 %v1222, %v1221
    %v1224 = vmul.f32 0.5, %v1223
    %v1225 = vsub.f32 1.5, %v1224
    %v1226 = vmul.f32 %v1221, %v1225
    %vm1227 = vweird.f32 %v1210
    %vm1228 = vweird.f32 %v1221
    %vm1229 = vmor %vm1227, %vm1228
    %v1230 = vsel %vm1229, %v1221, %v1226
    %v1231 = vmul.f32 %v1199, %v1220
    %v1232 = vmul.f32 %v1201, %v1230
    %v1233 = vld [vmem:[%s2] sm:$0xf]
    %v1234 = vld [vmem:[%s2 + $0x4] sm:$0xf]
    %v1237 = vunpack.c.l.b16 %v1233
    %v1238 = vunpack.c.l.b16 %v1234
    %v1239 = vpack.c.b16 %v1238, %v1237
    %v1243 = vunpack.c.l.b16 %v1002
    %v1244 = vunpack.c.l.b16 %v1003
    %v1245 = vunpack.c.l.b16 %v1004
    %v1246 = vpack.c.b16 %v1244, %v1243
    %v1247 = vpack.c.b16 %v1245, %v1245
    %v1250 = vsel %vm499, %v1239, 0
    %v1253 = vsel %vm503, %v1247, 0
    %1255 = vmatpush.bf16.msra.mxu0 0
    %1256 = vmatpush.bf16.msra.mxu0 0
    %1257 = vmatpush.bf16.msra.mxu0 0
    %1258 = vmatpush.bf16.msra.mxu0 0
    %1259 = vmatpush.bf16.msra.mxu0 0
    %1260 = vmatpush.bf16.msra.mxu0 0
    %1261 = vmatpush.bf16.msra.mxu0 %v1253
    %1262 = vmatpush.bf16.msra.mxu0 %v1246
    %1263 = vmatmul.bf16.gmra.mxu0 %v1250
    %v1264 = vpop.f32.mrf.mxu0
    %v1265 = vadd.f32 0.0, %v1264
    %v1266 = vpop.f32.mrf.mxu0
    %v1267 = vadd.f32 0.0, %v1266
    %1268 = vdwg.mxu0
    %v1269 = vpack.c.bf16 %v1265, %v1265
    %v1270 = vpack.c.bf16 %v1267, %v1267
    %v1273 = vunpack.c.l.b16 %v1269
    %v1274 = vunpack.c.l.b16 %v1270
    %v1275 = vpack.c.b16 %v1274, %v1273
    %v1277 = vld [vmem:[#allocation21] sm:$0xf]
    %v1278 = vld [vmem:[#allocation21 + $0x4] sm:$0xf]
    %v1279 = vld [vmem:[#allocation21 + $0x8] sm:$0xf]
    %v1280 = vld [vmem:[#allocation21 + $0xc] sm:$0xf]
    %v1281 = vld [vmem:[#allocation21 + $0x10] sm:$0xf]
    %v1282 = vld [vmem:[#allocation21 + $0x14] sm:$0xf]
    %v1283 = vld [vmem:[#allocation21 + $0x18] sm:$0xf]
    %v1284 = vld [vmem:[#allocation21 + $0x1c] sm:$0xf]
    %v1285 = vld [vmem:[#allocation21 + $0x20] sm:$0xf]
    %v1286 = vld [vmem:[#allocation21 + $0x24] sm:$0xf]
    %v1287 = vld [vmem:[#allocation21 + $0x28] sm:$0xf]
    %v1288 = vld [vmem:[#allocation21 + $0x2c] sm:$0xf]
    %v1289 = vld [vmem:[#allocation21 + $0x30] sm:$0xf]
    %v1290 = vld [vmem:[#allocation21 + $0x34] sm:$0xf]
    %v1291 = vld [vmem:[#allocation21 + $0x38] sm:$0xf]
    %v1292 = vld [vmem:[#allocation21 + $0x3c] sm:$0xf]
    %v1293 = vld [vmem:[#allocation21 + $0x40] sm:$0xf]
    %v1294 = vld [vmem:[#allocation21 + $0x44] sm:$0xf]
    %v1295 = vld [vmem:[#allocation21 + $0x48] sm:$0xf]
    %v1296 = vld [vmem:[#allocation21 + $0x4c] sm:$0xf]
    %v1297 = vld [vmem:[#allocation21 + $0x50] sm:$0xf]
    %v1298 = vld [vmem:[#allocation21 + $0x54] sm:$0xf]
    %v1299 = vld [vmem:[#allocation21 + $0x58] sm:$0xf]
    %v1300 = vld [vmem:[#allocation21 + $0x5c] sm:$0xf]
    %v1301 = vld [vmem:[#allocation21 + $0x60] sm:$0xf]
    %v1302 = vld [vmem:[#allocation21 + $0x64] sm:$0xf]
    %v1303 = vld [vmem:[#allocation21 + $0x68] sm:$0xf]
    %v1304 = vld [vmem:[#allocation21 + $0x6c] sm:$0xf]
    %v1305 = vld [vmem:[#allocation21 + $0x70] sm:$0xf]
    %v1306 = vld [vmem:[#allocation21 + $0x74] sm:$0xf]
    %v1307 = vld [vmem:[#allocation21 + $0x78] sm:$0xf]
    %v1308 = vld [vmem:[#allocation21 + $0x7c] sm:$0xf]
    %v1309 = vld [vmem:[#allocation23] sm:$0x1]
    %v1311 = vperm.slane %v1309, 0
    %v1345 = vunpack.c.l.b16 %v1277
    %v1346 = vunpack.c.l.b16 %v1278
    %v1347 = vunpack.c.l.b16 %v1279
    %v1348 = vunpack.c.l.b16 %v1280
    %v1349 = vunpack.c.l.b16 %v1281
    %v1350 = vunpack.c.l.b16 %v1282
    %v1351 = vunpack.c.l.b16 %v1283
    %v1352 = vunpack.c.l.b16 %v1284
    %v1353 = vunpack.c.l.b16 %v1285
    %v1354 = vunpack.c.l.b16 %v1286
    %v1355 = vunpack.c.l.b16 %v1287
    %v1356 = vunpack.c.l.b16 %v1288
    %v1357 = vunpack.c.l.b16 %v1289
    %v1358 = vunpack.c.l.b16 %v1290
    %v1359 = vunpack.c.l.b16 %v1291
    %v1360 = vunpack.c.l.b16 %v1292
    %v1361 = vunpack.c.l.b16 %v1293
    %v1362 = vunpack.c.l.b16 %v1294
    %v1363 = vunpack.c.l.b16 %v1295
    %v1364 = vunpack.c.l.b16 %v1296
    %v1365 = vunpack.c.l.b16 %v1297
    %v1366 = vunpack.c.l.b16 %v1298
    %v1367 = vunpack.c.l.b16 %v1299
    %v1368 = vunpack.c.l.b16 %v1300
    %v1369 = vunpack.c.l.b16 %v1301
    %v1370 = vunpack.c.l.b16 %v1302
    %v1371 = vunpack.c.l.b16 %v1303
    %v1372 = vunpack.c.l.b16 %v1304
    %v1373 = vunpack.c.l.b16 %v1305
    %v1374 = vunpack.c.l.b16 %v1306
    %v1375 = vunpack.c.l.b16 %v1307
    %v1376 = vunpack.c.l.b16 %v1308
    %v1377 = vpack.c.b16 %v1346, %v1345
    %v1378 = vpack.c.b16 %v1348, %v1347
    %v1379 = vpack.c.b16 %v1350, %v1349
    %v1380 = vpack.c.b16 %v1352, %v1351
    %v1381 = vpack.c.b16 %v1354, %v1353
    %v1382 = vpack.c.b16 %v1356, %v1355
    %v1383 = vpack.c.b16 %v1358, %v1357
    %v1384 = vpack.c.b16 %v1360, %v1359
    %v1385 = vpack.c.b16 %v1362, %v1361
    %v1386 = vpack.c.b16 %v1364, %v1363
    %v1387 = vpack.c.b16 %v1366, %v1365
    %v1388 = vpack.c.b16 %v1368, %v1367
    %v1389 = vpack.c.b16 %v1370, %v1369
    %v1390 = vpack.c.b16 %v1372, %v1371
    %v1391 = vpack.c.b16 %v1374, %v1373
    %v1392 = vpack.c.b16 %v1376, %v1375
    %1409 = vmatpush.bf16.msra.mxu0 %v1384
    %1410 = vmatpush.bf16.msra.mxu0 %v1383
    %1411 = vmatpush.bf16.msra.mxu0 %v1382
    %1412 = vmatpush.bf16.msra.mxu0 %v1381
    %1413 = vmatpush.bf16.msra.mxu0 %v1380
    %1414 = vmatpush.bf16.msra.mxu0 %v1379
    %1415 = vmatpush.bf16.msra.mxu0 %v1378
    %1416 = vmatpush.bf16.msra.mxu0 %v1377
    %1417 = vmatmul.bf16.gmra.mxu0 %v1275
    %v1418 = vpop.f32.mrf.mxu0
    %v1419 = vadd.f32 %v1311, %v1418
    %v1420 = vpop.f32.mrf.mxu0
    %v1421 = vadd.f32 %v1311, %v1420
    %1422 = vdwg.mxu0
    %1423 = vmatpush.bf16.msra.mxu0 %v1392
    %1424 = vmatpush.bf16.msra.mxu0 %v1391
    %1425 = vmatpush.bf16.msra.mxu0 %v1390
    %1426 = vmatpush.bf16.msra.mxu0 %v1389
    %1427 = vmatpush.bf16.msra.mxu0 %v1388
    %1428 = vmatpush.bf16.msra.mxu0 %v1387
    %1429 = vmatpush.bf16.msra.mxu0 %v1386
    %1430 = vmatpush.bf16.msra.mxu0 %v1385
    %1431 = vmatmul.bf16.gmra.mxu0 %v1016
    %v1432 = vpop.f32.mrf.mxu0
    %v1433 = vadd.f32 %v1419, %v1432
    %v1434 = vpop.f32.mrf.mxu0
    %v1435 = vadd.f32 %v1421, %v1434
    %1436 = vdwg.mxu0
    %v1437 = vmul.f32 %v1433, %v1433
    %v1438 = vmul.f32 %v1435, %v1435
    %1439 = vadd.xlane.f32.xlu0 %v1437
    %v1440 = vpop.xlane.xlu0 %1439
    %1441 = vadd.xlane.f32.xlu0 %v1438
    %v1442 = vpop.xlane.xlu0 %1441
    %v1443 = vmax.f32 %v1440, 1e-24
    %v1444 = vmax.f32 %v1442, 1e-24
    %v1445 = vrsqrt.pop %v1443
    %v1446 = vmul.f32 %v1445, %v1443
    %v1447 = vmul.f32 %v1446, %v1445
    %v1448 = vmul.f32 0.5, %v1447
    %v1449 = vsub.f32 1.5, %v1448
    %v1450 = vmul.f32 %v1445, %v1449
    %vm1451 = vweird.f32 %v1443
    %vm1452 = vweird.f32 %v1445
    %vm1453 = vmor %vm1451, %vm1452
    %v1454 = vsel %vm1453, %v1445, %v1450
    %v1455 = vrsqrt.pop %v1444
    %v1456 = vmul.f32 %v1455, %v1444
    %v1457 = vmul.f32 %v1456, %v1455
    %v1458 = vmul.f32 0.5, %v1457
    %v1459 = vsub.f32 1.5, %v1458
    %v1460 = vmul.f32 %v1455, %v1459
    %vm1461 = vweird.f32 %v1444
    %vm1462 = vweird.f32 %v1455
    %vm1463 = vmor %vm1461, %vm1462
    %v1464 = vsel %vm1463, %v1455, %v1460
    %v1465 = vmul.f32 %v1433, %v1454
    %v1466 = vmul.f32 %v1435, %v1464
    %v1467 = vadd.f32 %v1231, %v1465
    %v1468 = vadd.f32 %v1232, %v1466
    %v1469 = vmul.f32 %v1467, 0.5
    %v1470 = vmul.f32 %v1468, 0.5
    %v1471 = vmax.f32 %v1469, 0.0
    %v1472 = vmax.f32 %v1470, 0.0
    %v1473 = vpack.c.bf16 %v1471, %v1471
    %v1474 = vpack.c.bf16 %v1472, %v1472
    %1475 = vst [vmem:[%s17] sm:$0xf] %v1473
    %1476 = vst [vmem:[%s17 + $0x4] sm:$0xf] %v1474
    %v1477 = vld [vmem:[%s1] sm:$0xf]
    %v1478 = vld [vmem:[%s1 + $0x4] sm:$0xf]
    %v1479 = vld [vmem:[%s1 + $0x8] sm:$0xf]
    %v1483 = vunpack.c.l.b16 %v1477
    %v1484 = vunpack.c.l.b16 %v1478
    %v1485 = vunpack.c.l.b16 %v1479
    %v1486 = vpack.c.b16 %v1484, %v1483
    %v1487 = vpack.c.b16 %v1485, %v1485
    %v1489 = vsel %vm267, %v1486, 0
    %v1492 = vsel %vm267, %v1487, 0
    %1494 = vmatpush.bf16.msra.mxu0 0
    %1495 = vmatpush.bf16.msra.mxu0 0
    %1496 = vmatpush.bf16.msra.mxu0 0
    %1497 = vmatpush.bf16.msra.mxu0 0
    %1498 = vmatpush.bf16.msra.mxu0 0
    %1499 = vmatpush.bf16.msra.mxu0 0
    %1500 = vmatpush.bf16.msra.mxu0 0
    %1501 = vmatpush.bf16.msra.mxu0 %v1016
    %1502 = vmatmul.bf16.gmra.mxu0 %v1489
    %v1503 = vpop.f32.mrf.mxu0
    %v1504 = vadd.f32 0.0, %v1503
    %v1505 = vpop.f32.mrf.mxu0
    %v1506 = vadd.f32 0.0, %v1505
    %1507 = vmatmul.bf16.gmra.mxu0 %v1492
    %v1508 = vpop.f32.mrf.mxu0
    %v1509 = vadd.f32 0.0, %v1508
    %v1510 = vpop.f32.mrf.mxu0
    %1511 = vdwg.mxu0
    %v1512 = vpack.c.bf16 %v1504, %v1504
    %v1513 = vpack.c.bf16 %v1506, %v1506
    %v1514 = vpack.c.bf16 %v1509, %v1509
    %v1518 = vunpack.c.l.b16 %v1512
    %v1519 = vunpack.c.l.b16 %v1513
    %v1520 = vunpack.c.l.b16 %v1514
    %v1521 = vpack.c.b16 %v1519, %v1518
    %v1522 = vpack.c.b16 %v1520, %v1520
    %v1526 = vld [vmem:[#allocation18] sm:$0xf]
    %v1527 = vld [vmem:[#allocation18 + $0x4] sm:$0xf]
    %v1528 = vld [vmem:[#allocation18 + $0x8] sm:$0xf]
    %v1529 = vld [vmem:[#allocation18 + $0xc] sm:$0xf]
    %v1530 = vld [vmem:[#allocation18 + $0x10] sm:$0xf]
    %v1531 = vld [vmem:[#allocation18 + $0x14] sm:$0xf]
    %v1532 = vld [vmem:[#allocation18 + $0x18] sm:$0xf]
    %v1533 = vld [vmem:[#allocation18 + $0x1c] sm:$0xf]
    %v1534 = vld [vmem:[#allocation18 + $0x20] sm:$0xf]
    %v1535 = vld [vmem:[#allocation18 + $0x24] sm:$0xf]
    %v1536 = vld [vmem:[#allocation18 + $0x28] sm:$0xf]
    %v1537 = vld [vmem:[#allocation18 + $0x2c] sm:$0xf]
    %v1538 = vld [vmem:[#allocation18 + $0x30] sm:$0xf]
    %v1539 = vld [vmem:[#allocation18 + $0x34] sm:$0xf]
    %v1540 = vld [vmem:[#allocation18 + $0x38] sm:$0xf]
    %v1541 = vld [vmem:[#allocation18 + $0x3c] sm:$0xf]
    %v1542 = vld [vmem:[#allocation18 + $0x40] sm:$0xf]
    %v1543 = vld [vmem:[#allocation18 + $0x44] sm:$0xf]
    %v1544 = vld [vmem:[#allocation18 + $0x48] sm:$0xf]
    %v1545 = vld [vmem:[#allocation18 + $0x4c] sm:$0xf]
    %v1546 = vld [vmem:[#allocation18 + $0x50] sm:$0xf]
    %v1547 = vld [vmem:[#allocation18 + $0x54] sm:$0xf]
    %v1548 = vld [vmem:[#allocation18 + $0x58] sm:$0xf]
    %v1549 = vld [vmem:[#allocation18 + $0x5c] sm:$0xf]
    %v1550 = vld [vmem:[#allocation18 + $0x60] sm:$0xf]
    %v1551 = vld [vmem:[#allocation18 + $0x64] sm:$0xf]
    %v1552 = vld [vmem:[#allocation18 + $0x68] sm:$0xf]
    %v1553 = vld [vmem:[#allocation18 + $0x6c] sm:$0xf]
    %v1554 = vld [vmem:[#allocation18 + $0x70] sm:$0xf]
    %v1555 = vld [vmem:[#allocation18 + $0x74] sm:$0xf]
    %v1556 = vld [vmem:[#allocation18 + $0x78] sm:$0xf]
    %v1557 = vld [vmem:[#allocation18 + $0x7c] sm:$0xf]
    %v1558 = vld [vmem:[#allocation20] sm:$0x1]
    %v1560 = vperm.slane %v1558, 0
    %v1594 = vunpack.c.l.b16 %v1526
    %v1595 = vunpack.c.l.b16 %v1527
    %v1596 = vunpack.c.l.b16 %v1528
    %v1597 = vunpack.c.l.b16 %v1529
    %v1598 = vunpack.c.l.b16 %v1530
    %v1599 = vunpack.c.l.b16 %v1531
    %v1600 = vunpack.c.l.b16 %v1532
    %v1601 = vunpack.c.l.b16 %v1533
    %v1602 = vunpack.c.l.b16 %v1534
    %v1603 = vunpack.c.l.b16 %v1535
    %v1604 = vunpack.c.l.b16 %v1536
    %v1605 = vunpack.c.l.b16 %v1537
    %v1606 = vunpack.c.l.b16 %v1538
    %v1607 = vunpack.c.l.b16 %v1539
    %v1608 = vunpack.c.l.b16 %v1540
    %v1609 = vunpack.c.l.b16 %v1541
    %v1610 = vunpack.c.l.b16 %v1542
    %v1611 = vunpack.c.l.b16 %v1543
    %v1612 = vunpack.c.l.b16 %v1544
    %v1613 = vunpack.c.l.b16 %v1545
    %v1614 = vunpack.c.l.b16 %v1546
    %v1615 = vunpack.c.l.b16 %v1547
    %v1616 = vunpack.c.l.b16 %v1548
    %v1617 = vunpack.c.l.b16 %v1549
    %v1618 = vunpack.c.l.b16 %v1550
    %v1619 = vunpack.c.l.b16 %v1551
    %v1620 = vunpack.c.l.b16 %v1552
    %v1621 = vunpack.c.l.b16 %v1553
    %v1622 = vunpack.c.l.b16 %v1554
    %v1623 = vunpack.c.l.b16 %v1555
    %v1624 = vunpack.c.l.b16 %v1556
    %v1625 = vunpack.c.l.b16 %v1557
    %v1626 = vpack.c.b16 %v1595, %v1594
    %v1627 = vpack.c.b16 %v1597, %v1596
    %v1628 = vpack.c.b16 %v1599, %v1598
    %v1629 = vpack.c.b16 %v1601, %v1600
    %v1630 = vpack.c.b16 %v1603, %v1602
    %v1631 = vpack.c.b16 %v1605, %v1604
    %v1632 = vpack.c.b16 %v1607, %v1606
    %v1633 = vpack.c.b16 %v1609, %v1608
    %v1634 = vpack.c.b16 %v1611, %v1610
    %v1635 = vpack.c.b16 %v1613, %v1612
    %v1636 = vpack.c.b16 %v1615, %v1614
    %v1637 = vpack.c.b16 %v1617, %v1616
    %v1638 = vpack.c.b16 %v1619, %v1618
    %v1639 = vpack.c.b16 %v1621, %v1620
    %v1640 = vpack.c.b16 %v1623, %v1622
    %v1641 = vpack.c.b16 %v1625, %v1624
    %1658 = vmatpush.bf16.msra.mxu0 %v1633
    %1659 = vmatpush.bf16.msra.mxu0 %v1632
    %1660 = vmatpush.bf16.msra.mxu0 %v1631
    %1661 = vmatpush.bf16.msra.mxu0 %v1630
    %1662 = vmatpush.bf16.msra.mxu0 %v1629
    %1663 = vmatpush.bf16.msra.mxu0 %v1628
    %1664 = vmatpush.bf16.msra.mxu0 %v1627
    %1665 = vmatpush.bf16.msra.mxu0 %v1626
    %1666 = vmatmul.bf16.gmra.mxu0 %v1521
    %v1667 = vpop.f32.mrf.mxu0
    %v1668 = vadd.f32 %v1560, %v1667
    %v1669 = vpop.f32.mrf.mxu0
    %v1670 = vadd.f32 %v1560, %v1669
    %1671 = vmatmul.bf16.gmra.mxu0 %v1522
    %v1672 = vpop.f32.mrf.mxu0
    %v1673 = vadd.f32 %v1560, %v1672
    %v1674 = vpop.f32.mrf.mxu0
    %1675 = vdwg.mxu0
    %1676 = vmatpush.bf16.msra.mxu0 %v1641
    %1677 = vmatpush.bf16.msra.mxu0 %v1640
    %1678 = vmatpush.bf16.msra.mxu0 %v1639
    %1679 = vmatpush.bf16.msra.mxu0 %v1638
    %1680 = vmatpush.bf16.msra.mxu0 %v1637
    %1681 = vmatpush.bf16.msra.mxu0 %v1636
    %1682 = vmatpush.bf16.msra.mxu0 %v1635
    %1683 = vmatpush.bf16.msra.mxu0 %v1634
    %1684 = vmatmul.bf16.gmra.mxu0 %v1246
    %v1685 = vpop.f32.mrf.mxu0
    %v1686 = vadd.f32 %v1668, %v1685
    %v1687 = vpop.f32.mrf.mxu0
    %v1688 = vadd.f32 %v1670, %v1687
    %1689 = vmatmul.bf16.gmra.mxu0 %v1247
    %v1690 = vpop.f32.mrf.mxu0
    %v1691 = vadd.f32 %v1673, %v1690
    %v1692 = vpop.f32.mrf.mxu0
    %1693 = vdwg.mxu0
    %v1694 = vmul.f32 %v1686, %v1686
    %v1695 = vmul.f32 %v1688, %v1688
    %v1696 = vmul.f32 %v1691, %v1691
    %1697 = vadd.xlane.f32.xlu0 %v1694
    %v1698 = vpop.xlane.xlu0 %1697
    %1699 = vadd.xlane.f32.xlu0 %v1695
    %v1700 = vpop.xlane.xlu0 %1699
    %1701 = vadd.xlane.f32.xlu0 %v1696
    %v1702 = vpop.xlane.xlu0 %1701
    %v1703 = vmax.f32 %v1698, 1e-24
    %v1704 = vmax.f32 %v1700, 1e-24
    %v1705 = vmax.f32 %v1702, 1e-24
    %v1706 = vrsqrt.pop %v1703
    %v1707 = vmul.f32 %v1706, %v1703
    %v1708 = vmul.f32 %v1707, %v1706
    %v1709 = vmul.f32 0.5, %v1708
    %v1710 = vsub.f32 1.5, %v1709
    %v1711 = vmul.f32 %v1706, %v1710
    %vm1712 = vweird.f32 %v1703
    %vm1713 = vweird.f32 %v1706
    %vm1714 = vmor %vm1712, %vm1713
    %v1715 = vsel %vm1714, %v1706, %v1711
    %v1716 = vrsqrt.pop %v1704
    %v1717 = vmul.f32 %v1716, %v1704
    %v1718 = vmul.f32 %v1717, %v1716
    %v1719 = vmul.f32 0.5, %v1718
    %v1720 = vsub.f32 1.5, %v1719
    %v1721 = vmul.f32 %v1716, %v1720
    %vm1722 = vweird.f32 %v1704
    %vm1723 = vweird.f32 %v1716
    %vm1724 = vmor %vm1722, %vm1723
    %v1725 = vsel %vm1724, %v1716, %v1721
    %v1726 = vrsqrt.pop %v1705
    %v1727 = vmul.f32 %v1726, %v1705
    %v1728 = vmul.f32 %v1727, %v1726
    %v1729 = vmul.f32 0.5, %v1728
    %v1730 = vsub.f32 1.5, %v1729
    %v1731 = vmul.f32 %v1726, %v1730
    %vm1732 = vweird.f32 %v1705
    %vm1733 = vweird.f32 %v1726
    %vm1734 = vmor %vm1732, %vm1733
    %v1735 = vsel %vm1734, %v1726, %v1731
    %v1736 = vmul.f32 %v1686, %v1715
    %v1737 = vmul.f32 %v1688, %v1725
    %v1738 = vmul.f32 %v1691, %v1735
    %v1739 = vmax.f32 %v1736, 0.0
    %v1740 = vmax.f32 %v1737, 0.0
    %v1741 = vmax.f32 %v1738, 0.0
    %v1742 = vpack.c.bf16 %v1739, %v1739
    %v1743 = vpack.c.bf16 %v1740, %v1740
    %v1744 = vpack.c.bf16 %v1741, %v1741
    %1745 = vst [vmem:[%s18] sm:$0xf] %v1742
    %1746 = vst [vmem:[%s18 + $0x4] sm:$0xf] %v1743
    %1747 = vst [vmem:[%s18 + $0x8] sm:$0xf] %v1744
    // Predicated region
    $region122: #{forward.1} parent=1 // pred_check
      _
    $region123: #{forward.1} parent=1 // pred_check_branch
      %1749 = sbr.rel (0) target = $region125
    $region124: #{forward.1} parent=1 // pred_region
      _
    $region125: #{forward.1} parent=1 // pred_fallthru
      _
    // Predicated region
    $region126: #{forward.1} parent=1 // pred_check
      _
    $region127: #{forward.1} parent=1 // pred_check_branch
      %1751 = sbr.rel (0) target = $region129
    $region128: #{forward.1} parent=1 // pred_region
      _
    $region129: #{forward.1} parent=1 // pred_fallthru
      _
    // Predicated region
    $region130: #{forward.1} parent=1 // pred_check
      _
    $region131: #{forward.1} parent=1 // pred_check_branch
      %1753 = sbr.rel (0) target = $region133
    $region132: #{forward.1} parent=1 // pred_region
      _
    $region133: #{forward.1} parent=1 // pred_fallthru
      _
    // Predicated region
    $region134: #{forward.1} parent=1 // pred_check
      _
    $region135: #{forward.1} parent=1 // pred_check_branch
      %1755 = sbr.rel (0) target = $region137
    $region136: #{forward.1} parent=1 // pred_region
      _
    $region137: #{forward.1} parent=1 // pred_fallthru
      _
    %1756 = vsyncpa [#allocation5], 1
    %1757 = vsyncpa [#allocation7], 1
    %1758 = vsyncpa [#allocation10], 1
    %1759 = vsyncpa [#allocation13], 1
    %1760 = vsyncpa [#allocation16], 1
    %1761 = vsyncpa [#allocation19], 1
    %1762 = vsyncpa [#allocation22], 1

</llo_original>
